<compile_context>
chip_gen: v7x
topology: tpu7x:2x2x1
jax: 0.10.0
libtpu: 0.0.40
codegen_flags: <defaults>
</compile_context>

<pallas_src>
import jax
import jax.numpy as jnp
from jax.experimental import pallas as pl
from jax.experimental.pallas import tpu as pltpu


def _round_up(x, m):
    return (x + m - 1) // m * m


def _vmem_limit_bytes():
    """~75% of physical VMEM: 96 MiB on v5e/v6e (128 MiB), 48 MiB on v7x (64 MiB)."""
    try:
        cap = pltpu.get_tpu_info().vmem_capacity_bytes
    except Exception:                      # conservative fallback (v7x-sized)
        cap = 64 * 1024 * 1024
    return min(int(cap * 3 // 4), 100 * 1024 * 1024)


def _step_vmem_bytes(bb, tp, dinp, dp, cd_size, out_size):
    """Rough per-step working set: double-buffered I/O + resident weights + live temps."""
    f32 = 4
    dbuf_in = 2 * (bb * tp * dinp + 2 * bb * tp * tp) * f32   # reps + arc_in + arc_out
    dbuf_out = 2 * bb * tp * dp * out_size
    consts = dinp * 3 * dp * cd_size + 3 * 3 * dp * f32        # single-buffered weights/bvb
    temps = (bb * tp * dinp * cd_size                          # x cast
             + bb * tp * 3 * dp * f32                          # h (f32)
             + 2 * bb * tp * dp * cd_size                      # h_in/h_out casts
             + 2 * bb * tp * dp * f32)                         # agg + h_self
    return dbuf_in + dbuf_out + consts + temps


def _pick_block_batch(B, tp, dinp, dp, cd_size, out_size, vmem_budget,
                      target_rows=512):
    """Batch block: big enough for MXU-friendly row counts, small enough for the
    VMEM budget, and never more than B//2 so the grid has >= 2 steps (v7x 2-TC)."""
    bb_cap = max(1, B // 2)
    bb = 1
    while bb < bb_cap and bb * tp < target_rows:
        bb += 1
    while bb > 1 and _step_vmem_bytes(bb, tp, dinp, dp, cd_size, out_size) > vmem_budget:
        bb -= 1
    # TODO(synk): for very large T even bb=1 can exceed the budget; add a T-row
    # grid axis (tile the aggregation's output rows) instead of only shrinking bb.
    return bb


def _gcn_layer_kernel(reps_ref, arc_in_ref, arc_out_ref, w_ref, bvb_ref, out_ref):
    bb, t, din = reps_ref.shape
    dp = w_ref.shape[1] // 3
    cd = w_ref.dtype

    # Inputs arrive f32 from HBM; cast to the MXU compute dtype here (VPU cast
    # hides under the matmuls, no wrapper-side cast round trip). The reshape is
    # a layout no-op because T is sublane-padded and Din is lane-padded.
    x = reps_ref[...].reshape(bb * t, din).astype(cd)            # (BB*Tp, Dinp)

    bvb = bvb_ref[...]                                           # (3, 3*Dp) f32
    bias, v_gate, b_gate = bvb[0:1], bvb[1:2], bvb[2:3]

    # One fused MXU matmul for W_in / W_out / W_self (f32 accumulation).
    h = jnp.dot(x, w_ref[...], preferred_element_type=jnp.float32) + bias
    h = h * jax.nn.sigmoid(h * v_gate + b_gate)                  # gated, (BB*Tp, 3*Dp)

    h_in = h[:, :dp].reshape(bb, t, dp).astype(cd)
    h_out = h[:, dp:2 * dp].reshape(bb, t, dp).astype(cd)
    h_self = h[:, 2 * dp:].reshape(bb, t, dp)                    # stays f32

    # Two accumulating batched dots -- identical MXU cycles to the old fused
    # form, but no (BB, 2T, Dp) VMEM concat copy per step.
    agg = jnp.einsum("btk,bkd->btd", arc_in_ref[...].astype(cd), h_in,
                     preferred_element_type=jnp.float32)
    agg = agg + jnp.einsum("btk,bkd->btd", arc_out_ref[...].astype(cd), h_out,
                           preferred_element_type=jnp.float32)

    # arc_self is the identity matrix, so its bmm contribution is exactly h_self.
    out_ref[...] = (agg + h_self).astype(out_ref.dtype)


def gcn_layer_forward(reps, arc_in, arc_out, params, *,
                      compute_dtype=jnp.bfloat16, block_batch=None,
                      out_dtype=None, return_padded=False):
    """One gated GCN layer. Grid iterates over blocks of the batch dimension."""
    B, T, Din = reps.shape
    Dout = params["w_in"].shape[1]
    cd = jnp.dtype(compute_dtype)
    out_dt = jnp.dtype(out_dtype) if out_dtype is not None else reps.dtype

    # Layout padding: lanes (Din, Dout) -> multiples of 128; sublanes (T) -> 8/16.
    sub = 8 if cd.itemsize == 4 else 16
    Tp = _round_up(T, sub)
    Dinp = _round_up(Din, 128)
    Dp = _round_up(Dout, 128)

    vmem_limit = _vmem_limit_bytes()
    BB = block_batch if block_batch is not None else _pick_block_batch(
        B, Tp, Dinp, Dp, cd.itemsize, out_dt.itemsize,
        vmem_budget=int(vmem_limit * 0.8))
    Bp = _round_up(B, BB)
    grid = (Bp // BB,)

    def pad_to(a, shape):
        widths = tuple((0, s - d) for d, s in zip(a.shape, shape))
        return a if all(w == (0, 0) for w in widths) else jnp.pad(a, widths)

    # Activations / adjacencies stay in their original dtype (f32 here): the
    # compute-dtype cast happens inside the kernel.
    reps_p = pad_to(reps, (Bp, Tp, Dinp))
    arc_in_p = pad_to(arc_in, (Bp, Tp, Tp))
    arc_out_p = pad_to(arc_out, (Bp, Tp, Tp))

    def pad_w(w):      # (Din, Dout) -> (Dinp, Dp)
        return pad_to(w, (Dinp, Dp))

    def pad_row(v):    # (1, Dout) -> (1, Dp)
        return pad_to(v, (1, Dp))

    # Fused [Dinp, 3*Dp] weight (compute dtype) + packed (3, 3*Dp) f32 table
    # holding [bias ; V_gate ; broadcast scalar gate bias].
    w_cat = jnp.concatenate([pad_w(params["w_in"]), pad_w(params["w_out"]),
                             pad_w(params["w_self"])], axis=1).astype(cd)
    b_cat = jnp.concatenate([pad_row(params["b_in"]), pad_row(params["b_out"]),
                             pad_row(params["b_self"])], axis=1)
    v_cat = jnp.concatenate([pad_row(params["v_in"]), pad_row(params["v_out"]),
                             pad_row(params["v_self"])], axis=1)
    bg_cat = jnp.concatenate([jnp.broadcast_to(params["bg_in"], (1, Dp)),
                              jnp.broadcast_to(params["bg_out"], (1, Dp)),
                              jnp.broadcast_to(params["bg_self"], (1, Dp))], axis=1)
    bvb = jnp.concatenate([b_cat, v_cat, bg_cat], axis=0).astype(jnp.float32)

    f32b = 4
    cost = pl.CostEstimate(
        flops=int(2 * Bp * Tp * Dinp * 3 * Dp + 2 * 2 * Bp * Tp * Tp * Dp),
        transcendentals=int(Bp * Tp * 3 * Dp),
        bytes_accessed=int(Bp * Tp * Dinp * f32b + 2 * Bp * Tp * Tp * f32b
                           + Dinp * 3 * Dp * cd.itemsize + 3 * 3 * Dp * f32b
                           + Bp * Tp * Dp * out_dt.itemsize),
    )

    def build(single_buffer_consts):
        const_kw = ({"pipeline_mode": pl.Buffered(1)}
                    if single_buffer_consts else {})
        return pl.pallas_call(
            _gcn_layer_kernel,
            out_shape=jax.ShapeDtypeStruct((Bp, Tp, Dp), out_dt),
            grid_spec=pltpu.PrefetchScalarGridSpec(
                num_scalar_prefetch=0,
                grid=grid,
                in_specs=[
                    pl.BlockSpec((BB, Tp, Dinp), lambda b: (b, 0, 0)),   # reps block
                    pl.BlockSpec((BB, Tp, Tp), lambda b: (b, 0, 0)),     # arc_in block
                    pl.BlockSpec((BB, Tp, Tp), lambda b: (b, 0, 0)),     # arc_out block
                    pl.BlockSpec((Dinp, 3 * Dp), lambda b: (0, 0), **const_kw),  # weights
                    pl.BlockSpec((3, 3 * Dp), lambda b: (0, 0), **const_kw),     # bias/V/gate
                ],
                out_specs=pl.BlockSpec((BB, Tp, Dp), lambda b: (b, 0, 0)),
            ),
            compiler_params=pltpu.CompilerParams(
                dimension_semantics=("parallel",),   # batch blocks shard across TCs (v7x)
                vmem_limit_bytes=vmem_limit,         # per-generation budget (see above)
            ),
            cost_estimate=cost,
        )

    args = (reps_p, arc_in_p, arc_out_p, w_cat, bvb)
    try:
        # Single-buffer the grid-invariant weight/bvb blocks (frees VMEM at zero
        # DMA cost since their block index never changes).
        out_padded = build(True)(*args)
    except Exception:
        # Fallback for Pallas builds that reject pipeline_mode on pallas_call specs.
        out_padded = build(False)(*args)

    if return_padded:
        return out_padded                       # consumer tolerates the Dp-padded slab
    return out_padded[:B, :T, :Dout]


def init_gcn_layer_params(key, in_features, out_features):
    """Deterministic init mimicking PyTorch shapes (Linear + gate params)."""
    ks = jax.random.split(key, 9)
    bound = 1.0 / jnp.sqrt(jnp.float32(in_features))

    def linear(kw, kb):
        w = jax.random.uniform(kw, (in_features, out_features),
                               jnp.float32, -bound, bound)
        b = jax.random.uniform(kb, (1, out_features), jnp.float32, -bound, bound)
        return w, b

    w_in, b_in = linear(ks[0], ks[1])
    w_out, b_out = linear(ks[2], ks[3])
    w_self, b_self = linear(ks[4], ks[5])
    return {
        "w_in": w_in, "b_in": b_in,
        "w_out": w_out, "b_out": b_out,
        "w_self": w_self, "b_self": b_self,
        "v_in": jax.random.normal(ks[6], (1, out_features), jnp.float32),
        "bg_in": jnp.ones((1, 1), jnp.float32),
        "v_out": jax.random.normal(ks[7], (1, out_features), jnp.float32),
        "bg_out": jnp.ones((1, 1), jnp.float32),
        "v_self": jax.random.normal(ks[8], (1, out_features), jnp.float32),
        "bg_self": jnp.ones((1, 1), jnp.float32),
    }


def _reference_layer(reps, arc_in, arc_out, p, compute_dtype=jnp.bfloat16):
    """Pure-JAX reference matching PyTorch GCNLayer, with the same bf16 MXU casts."""
    cd = jnp.dtype(compute_dtype)

    def branch(w, b, v, bg):
        h = jnp.einsum("btk,kd->btd", reps.astype(cd), w.astype(cd),
                       preferred_element_type=jnp.float32) + b
        return h * jax.nn.sigmoid(h * v + bg[0, 0])

    h_in = branch(p["w_in"], p["b_in"], p["v_in"], p["bg_in"])
    h_out = branch(p["w_out"], p["b_out"], p["v_out"], p["bg_out"])
    h_self = branch(p["w_self"], p["b_self"], p["v_self"], p["bg_self"])
    agg = (jnp.einsum("btk,bkd->btd", arc_in.astype(cd), h_in.astype(cd),
                      preferred_element_type=jnp.float32)
           + jnp.einsum("btk,bkd->btd", arc_out.astype(cd), h_out.astype(cd),
                        preferred_element_type=jnp.float32))
    return agg + h_self


if __name__ == "__main__":
    key = jax.random.PRNGKey(0)
    B, T, IN_DIM, OUT_DIM = 2, 8, 16, 32

    k_reps, k_ain, k_aout, k_params = jax.random.split(key, 4)
    reps = jax.random.normal(k_reps, (B, T, IN_DIM), jnp.float32)
    # adjacency-like matrices (float values, as the module expects)
    arc_in = jax.random.uniform(k_ain, (B, T, T), jnp.float32)
    arc_out = jax.random.uniform(k_aout, (B, T, T), jnp.float32)

    params = init_gcn_layer_params(k_params, IN_DIM, OUT_DIM)

    out = gcn_layer_forward(reps, arc_in, arc_out, params)
    out = jax.block_until_ready(out)

    ref = _reference_layer(reps, arc_in, arc_out, params)
    assert out.shape == (B, T, OUT_DIM), out.shape
    max_err = float(jnp.max(jnp.abs(out - ref)))
    assert jnp.allclose(out, ref, atol=2e-2, rtol=2e-2), (
        "mismatch vs reference, max abs err = %f" % max_err)

    print("KERNEL_OK")
</pallas_src>

<mosaic_0001>
module attributes {stable_mosaic.version = 11 : i64} {
  func.func @_gcn_layer_kernel(%arg0: i32, %arg1: memref<1x16x128xf32, #tpu.memory_space<vmem>>, %arg2: memref<1x16x16xf32, #tpu.memory_space<vmem>>, %arg3: memref<1x16x16xf32, #tpu.memory_space<vmem>>, %arg4: memref<128x384xbf16, #tpu.memory_space<vmem>>, %arg5: memref<3x384xf32, #tpu.memory_space<vmem>>, %arg6: memref<1x16x128xf32, #tpu.memory_space<vmem>>) attributes {dimension_semantics = [#tpu.dimension_semantics<parallel>], iteration_bounds = array<i64: 2>, scalar_prefetch = 0 : i64, scratch_operands = 0 : i64, tpu.core_type = #tpu.core_type<tc>, window_params = [{transform_indices = @transform_0, window_bounds = array<i64: 1, 16, 128>}, {transform_indices = @transform_1, window_bounds = array<i64: 1, 16, 16>}, {transform_indices = @transform_2, window_bounds = array<i64: 1, 16, 16>}, {pipeline_mode = #tpu.pipeline_mode<synchronous>, transform_indices = @transform_3, window_bounds = array<i64: 128, 384>}, {pipeline_mode = #tpu.pipeline_mode<synchronous>, transform_indices = @transform_4, window_bounds = array<i64: 3, 384>}, {transform_indices = @transform_5, window_bounds = array<i64: 1, 16, 128>}]} {
    %c0 = arith.constant 0 : index
    %c0_0 = arith.constant 0 : index
    %c0_1 = arith.constant 0 : index
    %0 = vector.load %arg1[%c0, %c0_0, %c0_1] : memref<1x16x128xf32, #tpu.memory_space<vmem>>, vector<1x16x128xf32>
    %1 = vector.shape_cast %0 : vector<1x16x128xf32> to vector<16x128xf32>
    %2 = arith.truncf %1 : vector<16x128xf32> to vector<16x128xbf16>
    %c0_2 = arith.constant 0 : index
    %c0_3 = arith.constant 0 : index
    %3 = vector.load %arg5[%c0_2, %c0_3] : memref<3x384xf32, #tpu.memory_space<vmem>>, vector<3x384xf32>
    %4 = vector.extract_strided_slice %3 {offsets = [0, 0], sizes = [1, 384], strides = [1, 1]} : vector<3x384xf32> to vector<1x384xf32>
    %5 = vector.extract_strided_slice %3 {offsets = [1, 0], sizes = [1, 384], strides = [1, 1]} : vector<3x384xf32> to vector<1x384xf32>
    %6 = vector.extract_strided_slice %3 {offsets = [2, 0], sizes = [1, 384], strides = [1, 1]} : vector<3x384xf32> to vector<1x384xf32>
    %c0_4 = arith.constant 0 : index
    %c0_5 = arith.constant 0 : index
    %7 = vector.load %arg4[%c0_4, %c0_5] : memref<128x384xbf16, #tpu.memory_space<vmem>>, vector<128x384xbf16>
    %cst = arith.constant dense<0.000000e+00> : vector<16x384xf32>
    %8 = tpu.matmul %2, %7, %cst {dimension_numbers = #tpu.dot_dimension_numbers<[1], [0], [0], [1], [0, 0, 1, 1], [], []>} : vector<16x128xbf16>, vector<128x384xbf16>, vector<16x384xf32> -> vector<16x384xf32>
    %9 = vector.broadcast %4 : vector<1x384xf32> to vector<16x384xf32>
    %10 = arith.addf %8, %9 : vector<16x384xf32>
    %11 = vector.broadcast %5 : vector<1x384xf32> to vector<16x384xf32>
    %12 = arith.mulf %10, %11 : vector<16x384xf32>
    %13 = vector.broadcast %6 : vector<1x384xf32> to vector<16x384xf32>
    %14 = arith.addf %12, %13 : vector<16x384xf32>
    %15 = arith.negf %14 : vector<16x384xf32>
    %16 = math.exp %15 : vector<16x384xf32>
    %cst_6 = arith.constant 1.000000e+00 : f32
    %17 = vector.broadcast %cst_6 : f32 to vector<16x384xf32>
    %18 = arith.addf %17, %16 : vector<16x384xf32>
    %19 = arith.divf %17, %18 : vector<16x384xf32>
    %20 = arith.mulf %10, %19 : vector<16x384xf32>
    %21 = vector.extract_strided_slice %20 {offsets = [0, 0], sizes = [16, 128], strides = [1, 1]} : vector<16x384xf32> to vector<16x128xf32>
    %22 = vector.shape_cast %21 : vector<16x128xf32> to vector<1x16x128xf32>
    %23 = arith.truncf %22 : vector<1x16x128xf32> to vector<1x16x128xbf16>
    %24 = vector.extract_strided_slice %20 {offsets = [0, 128], sizes = [16, 128], strides = [1, 1]} : vector<16x384xf32> to vector<16x128xf32>
    %25 = vector.shape_cast %24 : vector<16x128xf32> to vector<1x16x128xf32>
    %26 = arith.truncf %25 : vector<1x16x128xf32> to vector<1x16x128xbf16>
    %27 = vector.extract_strided_slice %20 {offsets = [0, 256], sizes = [16, 128], strides = [1, 1]} : vector<16x384xf32> to vector<16x128xf32>
    %28 = vector.shape_cast %27 : vector<16x128xf32> to vector<1x16x128xf32>
    %c0_7 = arith.constant 0 : index
    %c0_8 = arith.constant 0 : index
    %c0_9 = arith.constant 0 : index
    %29 = vector.load %arg2[%c0_7, %c0_8, %c0_9] : memref<1x16x16xf32, #tpu.memory_space<vmem>>, vector<1x16x16xf32>
    %30 = arith.truncf %29 : vector<1x16x16xf32> to vector<1x16x16xbf16>
    "tpu.trace_start"() <{level = 10 : i32, message = "btk,bkd->btd"}> : () -> ()
    %cst_10 = arith.constant dense<0.000000e+00> : vector<1x16x128xf32>
    %31 = tpu.matmul %30, %23, %cst_10 {dimension_numbers = #tpu.dot_dimension_numbers<[2], [1], [1], [2], [0, 0, 0, 1, 1, 2], [0], [0]>} : vector<1x16x16xbf16>, vector<1x16x128xbf16>, vector<1x16x128xf32> -> vector<1x16x128xf32>
    "tpu.trace_stop"() : () -> ()
    %c0_11 = arith.constant 0 : index
    %c0_12 = arith.constant 0 : index
    %c0_13 = arith.constant 0 : index
    %32 = vector.load %arg3[%c0_11, %c0_12, %c0_13] : memref<1x16x16xf32, #tpu.memory_space<vmem>>, vector<1x16x16xf32>
    %33 = arith.truncf %32 : vector<1x16x16xf32> to vector<1x16x16xbf16>
    "tpu.trace_start"() <{level = 10 : i32, message = "btk,bkd->btd"}> : () -> ()
    %cst_14 = arith.constant dense<0.000000e+00> : vector<1x16x128xf32>
    %34 = tpu.matmul %33, %26, %cst_14 {dimension_numbers = #tpu.dot_dimension_numbers<[2], [1], [1], [2], [0, 0, 0, 1, 1, 2], [0], [0]>} : vector<1x16x16xbf16>, vector<1x16x128xbf16>, vector<1x16x128xf32> -> vector<1x16x128xf32>
    "tpu.trace_stop"() : () -> ()
    %35 = arith.addf %31, %34 : vector<1x16x128xf32>
    %36 = arith.addf %35, %28 : vector<1x16x128xf32>
    %c0_15 = arith.constant 0 : index
    %c0_16 = arith.constant 0 : index
    %c0_17 = arith.constant 0 : index
    %37 = vector.load %arg6[%c0_15, %c0_16, %c0_17] : memref<1x16x128xf32, #tpu.memory_space<vmem>>, vector<1x16x128xf32>
    tpu.vector_store %arg6[%c0_15, %c0_16, %c0_17], %36 {strides = array<i32>} : memref<1x16x128xf32, #tpu.memory_space<vmem>>, vector<1x16x128xf32>,
    return
  }
  func.func @transform_0(%arg0: i32) -> (i32, i32, i32) {
    %c0_i32 = arith.constant 0 : i32
    %c0_i32_0 = arith.constant 0 : i32
    %c0_i32_1 = arith.constant 0 : i32
    return %arg0, %c0_i32, %c0_i32_0 : i32, i32, i32
  }
  func.func @transform_1(%arg0: i32) -> (i32, i32, i32) {
    %c0_i32 = arith.constant 0 : i32
    %c0_i32_0 = arith.constant 0 : i32
    %c0_i32_1 = arith.constant 0 : i32
    return %arg0, %c0_i32, %c0_i32_0 : i32, i32, i32
  }
  func.func @transform_2(%arg0: i32) -> (i32, i32, i32) {
    %c0_i32 = arith.constant 0 : i32
    %c0_i32_0 = arith.constant 0 : i32
    %c0_i32_1 = arith.constant 0 : i32
    return %arg0, %c0_i32, %c0_i32_0 : i32, i32, i32
  }
  func.func @transform_3(%arg0: i32) -> (i32, i32) {
    %c0_i32 = arith.constant 0 : i32
    %c0_i32_0 = arith.constant 0 : i32
    %c0_i32_1 = arith.constant 0 : i32
    return %c0_i32, %c0_i32_0 : i32, i32
  }
  func.func @transform_4(%arg0: i32) -> (i32, i32) {
    %c0_i32 = arith.constant 0 : i32
    %c0_i32_0 = arith.constant 0 : i32
    %c0_i32_1 = arith.constant 0 : i32
    return %c0_i32, %c0_i32_0 : i32, i32
  }
  func.func @transform_5(%arg0: i32) -> (i32, i32, i32) {
    %c0_i32 = arith.constant 0 : i32
    %c0_i32_0 = arith.constant 0 : i32
    %c0_i32_1 = arith.constant 0 : i32
    return %arg0, %c0_i32, %c0_i32_0 : i32, i32, i32
  }
}

module attributes {stable_mosaic.version = 11 : i64} {
  func.func @_gcn_layer_kernel(%arg0: i32, %arg1: memref<1x16x128xf32, #tpu.memory_space<vmem>>, %arg2: memref<1x16x16xf32, #tpu.memory_space<vmem>>, %arg3: memref<1x16x16xf32, #tpu.memory_space<vmem>>, %arg4: memref<128x384xbf16, #tpu.memory_space<vmem>>, %arg5: memref<3x384xf32, #tpu.memory_space<vmem>>, %arg6: memref<1x16x128xf32, #tpu.memory_space<vmem>>) attributes {dimension_semantics = [#tpu.dimension_semantics<parallel>], iteration_bounds = array<i64: 2>, scalar_prefetch = 0 : i64, scratch_operands = 0 : i64, tpu.core_type = #tpu.core_type<tc>, window_params = [{transform_indices = @transform_0, window_bounds = array<i64: 1, 16, 128>}, {transform_indices = @transform_1, window_bounds = array<i64: 1, 16, 16>}, {transform_indices = @transform_2, window_bounds = array<i64: 1, 16, 16>}, {pipeline_mode = #tpu.pipeline_mode<synchronous>, transform_indices = @transform_3, window_bounds = array<i64: 128, 384>}, {pipeline_mode = #tpu.pipeline_mode<synchronous>, transform_indices = @transform_4, window_bounds = array<i64: 3, 384>}, {transform_indices = @transform_5, window_bounds = array<i64: 1, 16, 128>}]} {
    %c0 = arith.constant 0 : index
    %c0_0 = arith.constant 0 : index
    %c0_1 = arith.constant 0 : index
    %0 = vector.load %arg1[%c0, %c0_0, %c0_1] : memref<1x16x128xf32, #tpu.memory_space<vmem>>, vector<1x16x128xf32>
    %1 = vector.shape_cast %0 : vector<1x16x128xf32> to vector<16x128xf32>
    %2 = arith.truncf %1 : vector<16x128xf32> to vector<16x128xbf16>
    %c0_2 = arith.constant 0 : index
    %c0_3 = arith.constant 0 : index
    %3 = vector.load %arg5[%c0_2, %c0_3] : memref<3x384xf32, #tpu.memory_space<vmem>>, vector<3x384xf32>
    %4 = vector.extract_strided_slice %3 {offsets = [0, 0], sizes = [1, 384], strides = [1, 1]} : vector<3x384xf32> to vector<1x384xf32>
    %5 = vector.extract_strided_slice %3 {offsets = [1, 0], sizes = [1, 384], strides = [1, 1]} : vector<3x384xf32> to vector<1x384xf32>
    %6 = vector.extract_strided_slice %3 {offsets = [2, 0], sizes = [1, 384], strides = [1, 1]} : vector<3x384xf32> to vector<1x384xf32>
    %c0_4 = arith.constant 0 : index
    %c0_5 = arith.constant 0 : index
    %7 = vector.load %arg4[%c0_4, %c0_5] : memref<128x384xbf16, #tpu.memory_space<vmem>>, vector<128x384xbf16>
    %cst = arith.constant dense<0.000000e+00> : vector<16x384xf32>
    %8 = tpu.matmul %2, %7, %cst {dimension_numbers = #tpu.dot_dimension_numbers<[1], [0], [0], [1], [0, 0, 1, 1], [], []>} : vector<16x128xbf16>, vector<128x384xbf16>, vector<16x384xf32> -> vector<16x384xf32>
    %9 = vector.broadcast %4 : vector<1x384xf32> to vector<16x384xf32>
    %10 = arith.addf %8, %9 : vector<16x384xf32>
    %11 = vector.broadcast %5 : vector<1x384xf32> to vector<16x384xf32>
    %12 = arith.mulf %10, %11 : vector<16x384xf32>
    %13 = vector.broadcast %6 : vector<1x384xf32> to vector<16x384xf32>
    %14 = arith.addf %12, %13 : vector<16x384xf32>
    %15 = arith.negf %14 : vector<16x384xf32>
    %16 = math.exp %15 : vector<16x384xf32>
    %cst_6 = arith.constant 1.000000e+00 : f32
    %17 = vector.broadcast %cst_6 : f32 to vector<16x384xf32>
    %18 = arith.addf %17, %16 : vector<16x384xf32>
    %19 = arith.divf %17, %18 : vector<16x384xf32>
    %20 = arith.mulf %10, %19 : vector<16x384xf32>
    %21 = vector.extract_strided_slice %20 {offsets = [0, 0], sizes = [16, 128], strides = [1, 1]} : vector<16x384xf32> to vector<16x128xf32>
    %22 = vector.shape_cast %21 : vector<16x128xf32> to vector<1x16x128xf32>
    %23 = arith.truncf %22 : vector<1x16x128xf32> to vector<1x16x128xbf16>
    %24 = vector.extract_strided_slice %20 {offsets = [0, 128], sizes = [16, 128], strides = [1, 1]} : vector<16x384xf32> to vector<16x128xf32>
    %25 = vector.shape_cast %24 : vector<16x128xf32> to vector<1x16x128xf32>
    %26 = arith.truncf %25 : vector<1x16x128xf32> to vector<1x16x128xbf16>
    %27 = vector.extract_strided_slice %20 {offsets = [0, 256], sizes = [16, 128], strides = [1, 1]} : vector<16x384xf32> to vector<16x128xf32>
    %28 = vector.shape_cast %27 : vector<16x128xf32> to vector<1x16x128xf32>
    %c0_7 = arith.constant 0 : index
    %c0_8 = arith.constant 0 : index
    %c0_9 = arith.constant 0 : index
    %29 = vector.load %arg2[%c0_7, %c0_8, %c0_9] : memref<1x16x16xf32, #tpu.memory_space<vmem>>, vector<1x16x16xf32>
    %30 = arith.truncf %29 : vector<1x16x16xf32> to vector<1x16x16xbf16>
    "tpu.trace_start"() <{level = 10 : i32, message = "btk,bkd->btd"}> : () -> ()
    %cst_10 = arith.constant dense<0.000000e+00> : vector<1x16x128xf32>
    %31 = tpu.matmul %30, %23, %cst_10 {dimension_numbers = #tpu.dot_dimension_numbers<[2], [1], [1], [2], [0, 0, 0, 1, 1, 2], [0], [0]>} : vector<1x16x16xbf16>, vector<1x16x128xbf16>, vector<1x16x128xf32> -> vector<1x16x128xf32>
    "tpu.trace_stop"() : () -> ()
    %c0_11 = arith.constant 0 : index
    %c0_12 = arith.constant 0 : index
    %c0_13 = arith.constant 0 : index
    %32 = vector.load %arg3[%c0_11, %c0_12, %c0_13] : memref<1x16x16xf32, #tpu.memory_space<vmem>>, vector<1x16x16xf32>
    %33 = arith.truncf %32 : vector<1x16x16xf32> to vector<1x16x16xbf16>
    "tpu.trace_start"() <{level = 10 : i32, message = "btk,bkd->btd"}> : () -> ()
    %cst_14 = arith.constant dense<0.000000e+00> : vector<1x16x128xf32>
    %34 = tpu.matmul %33, %26, %cst_14 {dimension_numbers = #tpu.dot_dimension_numbers<[2], [1], [1], [2], [0, 0, 0, 1, 1, 2], [0], [0]>} : vector<1x16x16xbf16>, vector<1x16x128xbf16>, vector<1x16x128xf32> -> vector<1x16x128xf32>
    "tpu.trace_stop"() : () -> ()
    %35 = arith.addf %31, %34 : vector<1x16x128xf32>
    %36 = arith.addf %35, %28 : vector<1x16x128xf32>
    %c0_15 = arith.constant 0 : index
    %c0_16 = arith.constant 0 : index
    %c0_17 = arith.constant 0 : index
    %37 = vector.load %arg6[%c0_15, %c0_16, %c0_17] : memref<1x16x128xf32, #tpu.memory_space<vmem>>, vector<1x16x128xf32>
    tpu.vector_store %arg6[%c0_15, %c0_16, %c0_17], %36 {strides = array<i32>} : memref<1x16x128xf32, #tpu.memory_space<vmem>>, vector<1x16x128xf32>,
    return
  }
  func.func @transform_0(%arg0: i32) -> (i32, i32, i32) {
    %c0_i32 = arith.constant 0 : i32
    %c0_i32_0 = arith.constant 0 : i32
    %c0_i32_1 = arith.constant 0 : i32
    return %arg0, %c0_i32, %c0_i32_0 : i32, i32, i32
  }
  func.func @transform_1(%arg0: i32) -> (i32, i32, i32) {
    %c0_i32 = arith.constant 0 : i32
    %c0_i32_0 = arith.constant 0 : i32
    %c0_i32_1 = arith.constant 0 : i32
    return %arg0, %c0_i32, %c0_i32_0 : i32, i32, i32
  }
  func.func @transform_2(%arg0: i32) -> (i32, i32, i32) {
    %c0_i32 = arith.constant 0 : i32
    %c0_i32_0 = arith.constant 0 : i32
    %c0_i32_1 = arith.constant 0 : i32
    return %arg0, %c0_i32, %c0_i32_0 : i32, i32, i32
  }
  func.func @transform_3(%arg0: i32) -> (i32, i32) {
    %c0_i32 = arith.constant 0 : i32
    %c0_i32_0 = arith.constant 0 : i32
    %c0_i32_1 = arith.constant 0 : i32
    return %c0_i32, %c0_i32_0 : i32, i32
  }
  func.func @transform_4(%arg0: i32) -> (i32, i32) {
    %c0_i32 = arith.constant 0 : i32
    %c0_i32_0 = arith.constant 0 : i32
    %c0_i32_1 = arith.constant 0 : i32
    return %c0_i32, %c0_i32_0 : i32, i32
  }
  func.func @transform_5(%arg0: i32) -> (i32, i32, i32) {
    %c0_i32 = arith.constant 0 : i32
    %c0_i32_0 = arith.constant 0 : i32
    %c0_i32_1 = arith.constant 0 : i32
    return %arg0, %c0_i32, %c0_i32_0 : i32, i32, i32
  }
}

</mosaic_0001>

<llo_original>
// kernel: tpu_custom_call.1
$region0: #{tpu_custom_call.1}
  #allocation0 [shape = 'u32[]', space=smem, size = 0x4, offset = 0x4, fixed_abs, tag = 'smem constant byte address 0x4 - core index']
  #allocation1 [shape = 'u32[144,128]{1,0:T(1,128)}', space=vmem, size = 0x12000, scoped, tag = 'internal scratch']
  %s0 = inlined_call_operand.hbm [shape: f32[2,16,128], index: 0, kind: input, shape index: {}]
  %s1 = inlined_call_operand.hbm [shape: f32[2,16,16], index: 1, kind: input, shape index: {}]
  %s2 = inlined_call_operand.hbm [shape: f32[2,16,16], index: 2, kind: input, shape index: {}]
  %s3 = inlined_call_operand.hbm [shape: bf16[128,384], index: 3, kind: input, shape index: {}]
  %s4 = inlined_call_operand.vmem [shape: f32[3,384], index: 4, kind: input, shape index: {}]
  %s5 = inlined_call_operand.hbm [shape: f32[2,16,128], index: 5, kind: output, shape index: {}]
  %s6 = sld [smem:[#allocation0]]
  $region69: #{tpu_custom_call.1} parent=0
    _
  %s8 = ssub.s32 1, %s6
  %s9 = scalar_select 0, %s8, %s6
  $region1: #{tpu_custom_call.1} parent=0
    #allocation2 [shape = 'u8[16384]{0}', space=vmem, size = 0x4000, scoped, tag = 'input window, operand 0']
    #allocation3 [shape = 's32[2]{0}', space=sflag, size = 0x8, scoped, tag = 'scoped memory for tpu_custom_call.1']
    #allocation4 [shape = 's32[2]{0}', space=sflag, size = 0x8, scoped, tag = 'scoped memory for tpu_custom_call.1']
    #allocation5 [shape = 'u8[16384]{0}', space=vmem, size = 0x4000, scoped, tag = 'input window, operand 1']
    #allocation6 [shape = 's32[2]{0}', space=sflag, size = 0x8, scoped, tag = 'scoped memory for tpu_custom_call.1']
    #allocation7 [shape = 'u8[16384]{0}', space=vmem, size = 0x4000, scoped, tag = 'input window, operand 2']
    #allocation8 [shape = 'u8[98304]{0}', space=vmem, size = 0x18000, scoped, tag = 'input window, operand 3, single buffered']
    #allocation9 [shape = 's32[1]{0}', space=sflag, size = 0x4, scoped, tag = 'scoped memory for tpu_custom_call.1']
    #allocation10 [shape = 'u8[16384]{0}', space=vmem, size = 0x4000, scoped, tag = 'output window, operand 0']
    %10 = vsyncpa [#allocation3], 0
    %s11 = scalar_lea.sflag [#allocation3], 1
    %12 = vsyncpa %s11, 0
    %13 = vsyncpa [#allocation6], 0
    %s14 = scalar_lea.sflag [#allocation6], 1
    %15 = vsyncpa %s14, 0
    %16 = vsyncpa [#allocation9], 0
    %17 = vsyncpa [#allocation4], 0
    %s18 = scalar_lea.sflag [#allocation4], 1
    %19 = vsyncpa %s18, 0
    loop: start=0, step=1, limit=4
    $region2: #{tpu_custom_call.1} parent=1 // loop_pre_header
      _
    $region3: #{tpu_custom_call.1} parent=1 // loop_header
      %s21 = sphi 0, %s25
      %p22 = scmp.ge.s32.totalorder %s21, 4
      %s31 = sphi 0, %s33
      %s34 = sphi 0, %s31
      %s35 = sphi 0, %s34
      %s51 = sphi 0, %s35
      %s57 = sphi 0, %s59
      %s60 = sphi 0, %s57
      %s61 = sphi 0, %s60
      %s77 = sphi 0, %s61
      %s83 = sphi 0, %s85
      %s86 = sphi 0, %s83
      %s87 = sphi 0, %s86
      %s103 = sphi 0, %s87
      %s107 = sphi 0, %s107
      %s109 = sphi 0, %s107
      %s110 = sphi 0, %s109
      %s124 = sphi 0, %s110
      %s128 = sphi 0, %s128
      %s130 = sphi 0, %s128
      %s131 = sphi 0, %s130
      %s145 = sphi 0, %s131
      %s151 = sphi 0, %s153
      %s154 = sphi 0, %s151
      %s155 = sphi 0, %s154
      %s171 = sphi 0, %s155
    $region4: #{tpu_custom_call.1} parent=1 // loop_header_branch
      %24 = sbr.rel (%p22) target = $region8
    $region5: #{tpu_custom_call.1} parent=1 // loop_body
      %s26 = ssub.s32 %s21, 1
      %s27 = ssub.s32 %s21, 2
      %s28 = sadd.s32 %s21, 1
      %s29 = ssub.s32 %s21, %s28
      %p30 = scmp.eq.s32.totalorder %s29, 0
      %s32 = sadd.s32 %s31, 1
      %s33 = scalar_select %p30, %s31, %s32
      %p36 = pneg %p30
      %p37 = scmp.eq.s32.totalorder %s21, 1
      %p38 = por %p36, %p37
      %p39 = scmp.ne.s32.totalorder %s31, %s34
      %p40 = scmp.eq.s32.totalorder %s21, 0
      %p41 = por %p39, %p40
      %p42 = scmp.ne.s32.totalorder %s31, %s34
      %p43 = scmp.eq.s32.totalorder %s26, 1
      %p44 = por %p42, %p43
      %p45 = scmp.ne.s32.totalorder %s34, %s35
      %p46 = scmp.eq.s32.totalorder %s26, 0
      %p47 = por %p45, %p46
      %p48 = scmp.ne.s32.totalorder %s34, %s35
      %p49 = scmp.eq.s32.totalorder %s27, 1
      %p50 = por %p48, %p49
      %p52 = scmp.ne.s32.totalorder %s35, %s51
      %p53 = scmp.eq.s32.totalorder %s27, 0
      %p54 = por %p52, %p53
      %s55 = ssub.s32 %s21, %s28
      %p56 = scmp.eq.s32.totalorder %s55, 0
      %s58 = sadd.s32 %s57, 1
      %s59 = scalar_select %p56, %s57, %s58
      %p62 = pneg %p56
      %p63 = scmp.eq.s32.totalorder %s21, 1
      %p64 = por %p62, %p63
      %p65 = scmp.ne.s32.totalorder %s57, %s60
      %p66 = scmp.eq.s32.totalorder %s21, 0
      %p67 = por %p65, %p66
      %p68 = scmp.ne.s32.totalorder %s57, %s60
      %p69 = scmp.eq.s32.totalorder %s26, 1
      %p70 = por %p68, %p69
      %p71 = scmp.ne.s32.totalorder %s60, %s61
      %p72 = scmp.eq.s32.totalorder %s26, 0
      %p73 = por %p71, %p72
      %p74 = scmp.ne.s32.totalorder %s60, %s61
      %p75 = scmp.eq.s32.totalorder %s27, 1
      %p76 = por %p74, %p75
      %p78 = scmp.ne.s32.totalorder %s61, %s77
      %p79 = scmp.eq.s32.totalorder %s27, 0
      %p80 = por %p78, %p79
      %s81 = ssub.s32 %s21, %s28
      %p82 = scmp.eq.s32.totalorder %s81, 0
      %s84 = sadd.s32 %s83, 1
      %s85 = scalar_select %p82, %s83, %s84
      %p88 = pneg %p82
      %p89 = scmp.eq.s32.totalorder %s21, 1
      %p90 = por %p88, %p89
      %p91 = scmp.ne.s32.totalorder %s83, %s86
      %p92 = scmp.eq.s32.totalorder %s21, 0
      %p93 = por %p91, %p92
      %p94 = scmp.ne.s32.totalorder %s83, %s86
      %p95 = scmp.eq.s32.totalorder %s26, 1
      %p96 = por %p94, %p95
      %p97 = scmp.ne.s32.totalorder %s86, %s87
      %p98 = scmp.eq.s32.totalorder %s26, 0
      %p99 = por %p97, %p98
      %p100 = scmp.ne.s32.totalorder %s86, %s87
      %p101 = scmp.eq.s32.totalorder %s27, 1
      %p102 = por %p100, %p101
      %p104 = scmp.ne.s32.totalorder %s87, %s103
      %p105 = scmp.eq.s32.totalorder %s27, 0
      %p106 = por %p104, %p105
      %s108 = sadd.s32 %s107, 1
      %p111 = scmp.eq.s32.totalorder %s21, 1
      %p112 = scmp.ne.s32.totalorder %s107, %s109
      %p113 = scmp.eq.s32.totalorder %s21, 0
      %p114 = por %p112, %p113
      %p115 = scmp.ne.s32.totalorder %s107, %s109
      %p116 = scmp.eq.s32.totalorder %s26, 1
      %p117 = por %p115, %p116
      %p118 = scmp.ne.s32.totalorder %s109, %s110
      %p119 = scmp.eq.s32.totalorder %s26, 0
      %p120 = por %p118, %p119
      %p121 = scmp.ne.s32.totalorder %s109, %s110
      %p122 = scmp.eq.s32.totalorder %s27, 1
      %p123 = por %p121, %p122
      %p125 = scmp.ne.s32.totalorder %s110, %s124
      %p126 = scmp.eq.s32.totalorder %s27, 0
      %p127 = por %p125, %p126
      %s129 = sadd.s32 %s128, 1
      %p132 = scmp.eq.s32.totalorder %s21, 1
      %p133 = scmp.ne.s32.totalorder %s128, %s130
      %p134 = scmp.eq.s32.totalorder %s21, 0
      %p135 = por %p133, %p134
      %p136 = scmp.ne.s32.totalorder %s128, %s130
      %p137 = scmp.eq.s32.totalorder %s26, 1
      %p138 = por %p136, %p137
      %p139 = scmp.ne.s32.totalorder %s130, %s131
      %p140 = scmp.eq.s32.totalorder %s26, 0
      %p141 = por %p139, %p140
      %p142 = scmp.ne.s32.totalorder %s130, %s131
      %p143 = scmp.eq.s32.totalorder %s27, 1
      %p144 = por %p142, %p143
      %p146 = scmp.ne.s32.totalorder %s131, %s145
      %p147 = scmp.eq.s32.totalorder %s27, 0
      %p148 = por %p146, %p147
      %s149 = ssub.s32 %s21, %s28
      %p150 = scmp.eq.s32.totalorder %s149, 0
      %s152 = sadd.s32 %s151, 1
      %s153 = scalar_select %p150, %s151, %s152
      %p156 = pneg %p150
      %p157 = scmp.eq.s32.totalorder %s21, 1
      %p158 = por %p156, %p157
      %p159 = scmp.ne.s32.totalorder %s151, %s154
      %p160 = scmp.eq.s32.totalorder %s21, 0
      %p161 = por %p159, %p160
      %p162 = scmp.ne.s32.totalorder %s151, %s154
      %p163 = scmp.eq.s32.totalorder %s26, 1
      %p164 = por %p162, %p163
      %p165 = scmp.ne.s32.totalorder %s154, %s155
      %p166 = scmp.eq.s32.totalorder %s26, 0
      %p167 = por %p165, %p166
      %p168 = scmp.ne.s32.totalorder %s154, %s155
      %p169 = scmp.eq.s32.totalorder %s27, 1
      %p170 = por %p168, %p169
      %p172 = scmp.ne.s32.totalorder %s155, %s171
      %p173 = scmp.eq.s32.totalorder %s27, 0
      %p174 = por %p172, %p173
      %p175 = scmp.le.s32.totalorder 1, %s21
      %p176 = scmp.lt.s32.totalorder %s21, 3
      %p177 = pnand %p175, %p176
      %p178 = pneg %p177
      // Predicated region
      $region9: #{tpu_custom_call.1} parent=5 // pred_check
        _
      $region10: #{tpu_custom_call.1} parent=5 // pred_check_branch
        %180 = sbr.rel (%p177) target = $region12
      $region11: #{tpu_custom_call.1} parent=5 // pred_region
        %s181 = ssub.s32 %s21, 1
        // Predicated region
        $region13: #{tpu_custom_call.1} parent=11 // pred_check
          %p182 = pneg %p120
        $region14: #{tpu_custom_call.1} parent=11 // pred_check_branch
          %184 = sbr.rel (%p182) target = $region16
        $region15: #{tpu_custom_call.1} parent=11 // pred_region
          %s186 = ssub.s32 3072, 3072
          %187 = vsyncadd [#allocation9], %s186
          %s188 = sshll.u32 [#allocation8], 4
          %s189 = int_to_ptr.vmem [resolvable:$true] %s188
          %194 = dma.hbm_to_vmem [thread:$0]  %s3, 3072, %s189, [#allocation9], 192, 192, 12
        $region16: #{tpu_custom_call.1} parent=11 // pred_fallthru
          _
        // Predicated region
        $region17: #{tpu_custom_call.1} parent=11 // pred_check
          %p195 = pneg %p141
        $region18: #{tpu_custom_call.1} parent=11 // pred_check_branch
          %197 = sbr.rel (%p195) target = $region20
        $region19: #{tpu_custom_call.1} parent=11 // pred_region
          _
        $region20: #{tpu_custom_call.1} parent=11 // pred_fallthru
          _
      $region12: #{tpu_custom_call.1} parent=5 // pred_fallthru
        _
      %p198 = scmp.lt.s32.totalorder %s21, 2
      // Predicated region
      $region21: #{tpu_custom_call.1} parent=5 // pred_check
        %p199 = pneg %p198
      $region22: #{tpu_custom_call.1} parent=5 // pred_check_branch
        %201 = sbr.rel (%p199) target = $region24
      $region23: #{tpu_custom_call.1} parent=5 // pred_region
        // Predicated region
        $region25: #{tpu_custom_call.1} parent=23 // pred_check
          %p202 = pneg %p41
        $region26: #{tpu_custom_call.1} parent=23 // pred_check_branch
          %204 = sbr.rel (%p202) target = $region28
        $region27: #{tpu_custom_call.1} parent=23 // pred_region
          %s205 = sand.u32 %s31, 1
          %s206 = scalar_lea.sflag [#allocation3], %s205
          %s207 = sand.u32 %s31, 1
          %s208 = smul.addr %s207, 16
          %s209 = scalar_lea.vmem [#allocation2], %s208
          %s211 = ssub.s32 256, 256
          %212 = vsyncadd %s206, %s211
          %s213 = smul.addr %s21, 2
          %s214 = smul.addr %s213, 128
          %s215 = scalar_lea.hbm %s0, %s214
          %s216 = sshll.u32 %s209, 4
          %s217 = int_to_ptr.vmem [resolvable:$true] %s216
          %222 = dma.hbm_to_vmem [thread:$0]  %s215, 256, %s217, %s206, 128, 128, 8
        $region28: #{tpu_custom_call.1} parent=23 // pred_fallthru
          _
        // Predicated region
        $region29: #{tpu_custom_call.1} parent=23 // pred_check
          %p223 = pneg %p67
        $region30: #{tpu_custom_call.1} parent=23 // pred_check_branch
          %225 = sbr.rel (%p223) target = $region32
        $region31: #{tpu_custom_call.1} parent=23 // pred_region
          %s226 = sand.u32 %s21, 1
          %s227 = scalar_lea.sflag [#allocation6], %s226
          %s228 = sand.u32 %s57, 1
          %s229 = smul.addr %s228, 16
          %s230 = scalar_lea.vmem [#allocation5], %s229
          %s232 = ssub.s32 256, 256
          %233 = vsyncadd %s227, %s232
          %s234 = smul.addr %s21, 2
          %s235 = smul.addr %s234, 128
          %s236 = scalar_lea.hbm %s1, %s235
          %s237 = sshll.u32 %s230, 4
          %s238 = int_to_ptr.vmem [resolvable:$true] %s237
          %243 = dma.hbm_to_vmem [thread:$0]  %s236, 256, %s238, %s227, 128, 128, 8
        $region32: #{tpu_custom_call.1} parent=23 // pred_fallthru
          _
        // Predicated region
        $region33: #{tpu_custom_call.1} parent=23 // pred_check
          %p244 = pneg %p93
        $region34: #{tpu_custom_call.1} parent=23 // pred_check_branch
          %246 = sbr.rel (%p244) target = $region36
        $region35: #{tpu_custom_call.1} parent=23 // pred_region
          %s247 = sand.u32 %s21, 1
          %s248 = scalar_lea.sflag [#allocation6], %s247
          %s249 = sand.u32 %s83, 1
          %s250 = smul.addr %s249, 16
          %s251 = scalar_lea.vmem [#allocation7], %s250
          %s253 = ssub.s32 256, 256
          %254 = vsyncadd %s248, %s253
          %s255 = smul.addr %s21, 2
          %s256 = smul.addr %s255, 128
          %s257 = scalar_lea.hbm %s2, %s256
          %s258 = sshll.u32 %s251, 4
          %s259 = int_to_ptr.vmem [resolvable:$true] %s258
          %264 = dma.hbm_to_vmem [thread:$0]  %s257, 256, %s259, %s248, 128, 128, 8
        $region36: #{tpu_custom_call.1} parent=23 // pred_fallthru
          _
      $region24: #{tpu_custom_call.1} parent=5 // pred_fallthru
        _
      %p265 = scmp.le.s32.totalorder 1, %s21
      %p266 = scmp.lt.s32.totalorder %s21, 3
      %p267 = pnand %p265, %p266
      %p268 = pneg %p267
      // Predicated region
      $region37: #{tpu_custom_call.1} parent=5 // pred_check
        _
      $region38: #{tpu_custom_call.1} parent=5 // pred_check_branch
        %270 = sbr.rel (%p267) target = $region40
      $region39: #{tpu_custom_call.1} parent=5 // pred_region
        %s271 = ssub.s32 %s21, 1
        %s272 = sand.u32 %s34, 1
        %s273 = scalar_lea.sflag [#allocation3], %s272
        %s274 = sand.u32 %s34, 1
        %s275 = smul.addr %s274, 16
        %s276 = scalar_lea.vmem [#allocation2], %s275
        // Predicated region
        $region41: #{tpu_custom_call.1} parent=39 // pred_check
          %p277 = pneg %p47
        $region42: #{tpu_custom_call.1} parent=39 // pred_check_branch
          %279 = sbr.rel (%p277) target = $region44
        $region43: #{tpu_custom_call.1} parent=39 // pred_region
          %280 = dma.done %s273, 256
        $region44: #{tpu_custom_call.1} parent=39 // pred_fallthru
          _
        %s281 = sand.u32 %s26, 1
        %s282 = scalar_lea.sflag [#allocation6], %s281
        %s283 = sand.u32 %s60, 1
        %s284 = smul.addr %s283, 16
        %s285 = scalar_lea.vmem [#allocation5], %s284
        // Predicated region
        $region45: #{tpu_custom_call.1} parent=39 // pred_check
          %p286 = pneg %p73
        $region46: #{tpu_custom_call.1} parent=39 // pred_check_branch
          %288 = sbr.rel (%p286) target = $region48
        $region47: #{tpu_custom_call.1} parent=39 // pred_region
          %289 = dma.done %s282, 256
        $region48: #{tpu_custom_call.1} parent=39 // pred_fallthru
          _
        %s290 = sand.u32 %s26, 1
        %s291 = scalar_lea.sflag [#allocation6], %s290
        %s292 = sand.u32 %s86, 1
        %s293 = smul.addr %s292, 16
        %s294 = scalar_lea.vmem [#allocation7], %s293
        // Predicated region
        $region49: #{tpu_custom_call.1} parent=39 // pred_check
          %p295 = pneg %p99
        $region50: #{tpu_custom_call.1} parent=39 // pred_check_branch
          %297 = sbr.rel (%p295) target = $region52
        $region51: #{tpu_custom_call.1} parent=39 // pred_region
          %298 = dma.done %s291, 256
        $region52: #{tpu_custom_call.1} parent=39 // pred_fallthru
          _
        // Predicated region
        $region53: #{tpu_custom_call.1} parent=39 // pred_check
          %p299 = pneg %p120
        $region54: #{tpu_custom_call.1} parent=39 // pred_check_branch
          %301 = sbr.rel (%p299) target = $region56
        $region55: #{tpu_custom_call.1} parent=39 // pred_region
          %302 = dma.done [#allocation9], 3072
        $region56: #{tpu_custom_call.1} parent=39 // pred_fallthru
          _
        %s303 = sand.u32 %s34, 1
        %s304 = scalar_lea.sflag [#allocation3], %s303
        %s305 = sand.u32 %s34, 1
        %s306 = smul.addr %s305, 16
        %s307 = scalar_lea.vmem [#allocation2], %s306
        %p308 = pneg %p47
        %p309 = pneg %p44
        %s310 = sand.u32 %s26, 1
        %s311 = scalar_lea.sflag [#allocation6], %s310
        %s312 = sand.u32 %s60, 1
        %s313 = smul.addr %s312, 16
        %s314 = scalar_lea.vmem [#allocation5], %s313
        %p315 = pneg %p73
        %p316 = pneg %p70
        %s317 = sand.u32 %s26, 1
        %s318 = scalar_lea.sflag [#allocation6], %s317
        %s319 = sand.u32 %s86, 1
        %s320 = smul.addr %s319, 16
        %s321 = scalar_lea.vmem [#allocation7], %s320
        %p322 = pneg %p99
        %p323 = pneg %p96
        %p324 = pneg %p120
        %p325 = pneg %p117
        %p326 = pneg %p141
        %p327 = pneg %p138
        %p328 = pneg %p167
        %p329 = pneg %p164
        %s330 = sand.u32 %s154, 1
        %s331 = scalar_lea.sflag [#allocation4], %s330
        %s332 = sand.u32 %s154, 1
        %s333 = smul.addr %s332, 16
        %s334 = scalar_lea.vmem [#allocation10], %s333
        %v336 = vld [vmem:[%s276] sm:$0xff]
        %v337 = vld [vmem:[%s276 + $0x8] sm:$0xff]
        %v338 = vpack.c.bf16 %v337, %v336
        %v339 = vld [vmem:[%s4] sm:$0x77]
        %v340 = vld [vmem:[%s4 + $0x8] sm:$0x7]
        %v341 = vld [vmem:[#allocation8] sm:$0xff]
        %v342 = vld [vmem:[#allocation8 + $0x8] sm:$0xf]
        %v343 = vld [vmem:[#allocation8 + $0xc] sm:$0xff]
        %v344 = vld [vmem:[#allocation8 + $0x14] sm:$0xf]
        %v345 = vld [vmem:[#allocation8 + $0x18] sm:$0xff]
        %v346 = vld [vmem:[#allocation8 + $0x20] sm:$0xf]
        %v347 = vld [vmem:[#allocation8 + $0x24] sm:$0xff]
        %v348 = vld [vmem:[#allocation8 + $0x2c] sm:$0xf]
        %v349 = vld [vmem:[#allocation8 + $0x30] sm:$0xff]
        %v350 = vld [vmem:[#allocation8 + $0x38] sm:$0xf]
        %v351 = vld [vmem:[#allocation8 + $0x3c] sm:$0xff]
        %v352 = vld [vmem:[#allocation8 + $0x44] sm:$0xf]
        %v353 = vld [vmem:[#allocation8 + $0x48] sm:$0xff]
        %v354 = vld [vmem:[#allocation8 + $0x50] sm:$0xf]
        %v355 = vld [vmem:[#allocation8 + $0x54] sm:$0xff]
        %v356 = vld [vmem:[#allocation8 + $0x5c] sm:$0xf]
        %v357 = vld [vmem:[#allocation8 + $0x60] sm:$0xff]
        %v358 = vld [vmem:[#allocation8 + $0x68] sm:$0xf]
        %v359 = vld [vmem:[#allocation8 + $0x6c] sm:$0xff]
        %v360 = vld [vmem:[#allocation8 + $0x74] sm:$0xf]
        %v361 = vld [vmem:[#allocation8 + $0x78] sm:$0xff]
        %v362 = vld [vmem:[#allocation8 + $0x80] sm:$0xf]
        %v363 = vld [vmem:[#allocation8 + $0x84] sm:$0xff]
        %v364 = vld [vmem:[#allocation8 + $0x8c] sm:$0xf]
        %v365 = vld [vmem:[#allocation8 + $0x90] sm:$0xff]
        %v366 = vld [vmem:[#allocation8 + $0x98] sm:$0xf]
        %v367 = vld [vmem:[#allocation8 + $0x9c] sm:$0xff]
        %v368 = vld [vmem:[#allocation8 + $0xa4] sm:$0xf]
        %v369 = vld [vmem:[#allocation8 + $0xa8] sm:$0xff]
        %v370 = vld [vmem:[#allocation8 + $0xb0] sm:$0xf]
        %v371 = vld [vmem:[#allocation8 + $0xb4] sm:$0xff]
        %v372 = vld [vmem:[#allocation8 + $0xbc] sm:$0xf]
        %v375 = vlaneseq
        %v376 = vshrl.u32 %v375, 7
        %v377 = vsub.s32 0, %v376
        %v378 = vrot.slane %v339, %v377
        %v379 = vlaneseq
        %v380 = vshrl.u32 %v379, 7
        %v381 = vsub.s32 4, %v380
        %v382 = vrot.slane %v339, %v381
        %v383 = vlaneseq
        %v384 = vshrl.u32 %v383, 7
        %v385 = vsub.s32 0, %v384
        %v386 = vrot.slane %v340, %v385
        %v390 = vlaneseq
        %v391 = vshrl.u32 %v390, 7
        %v392 = vsub.s32 0, %v391
        %v393 = vrot.slane %v378, %v392
        %v394 = vlaneseq
        %v395 = vshrl.u32 %v394, 7
        %v396 = vsub.s32 0, %v395
        %v397 = vrot.slane %v382, %v396
        %v398 = vlaneseq
        %v399 = vshrl.u32 %v398, 7
        %v400 = vsub.s32 0, %v399
        %v401 = vrot.slane %v386, %v400
        %v434 = vunpack.c.l.b16 %v341
        %v435 = vunpack.c.h.b16 %v341
        %v436 = vunpack.c.l.b16 %v342
        %v437 = vunpack.c.l.b16 %v343
        %v438 = vunpack.c.h.b16 %v343
        %v439 = vunpack.c.l.b16 %v344
        %v440 = vunpack.c.l.b16 %v345
        %v441 = vunpack.c.h.b16 %v345
        %v442 = vunpack.c.l.b16 %v346
        %v443 = vunpack.c.l.b16 %v347
        %v444 = vunpack.c.h.b16 %v347
        %v445 = vunpack.c.l.b16 %v348
        %v446 = vunpack.c.l.b16 %v349
        %v447 = vunpack.c.h.b16 %v349
        %v448 = vunpack.c.l.b16 %v350
        %v449 = vunpack.c.l.b16 %v351
        %v450 = vunpack.c.h.b16 %v351
        %v451 = vunpack.c.l.b16 %v352
        %v452 = vunpack.c.l.b16 %v353
        %v453 = vunpack.c.h.b16 %v353
        %v454 = vunpack.c.l.b16 %v354
        %v455 = vunpack.c.l.b16 %v355
        %v456 = vunpack.c.h.b16 %v355
        %v457 = vunpack.c.l.b16 %v356
        %v458 = vunpack.c.l.b16 %v357
        %v459 = vunpack.c.h.b16 %v357
        %v460 = vunpack.c.l.b16 %v358
        %v461 = vunpack.c.l.b16 %v359
        %v462 = vunpack.c.h.b16 %v359
        %v463 = vunpack.c.l.b16 %v360
        %v464 = vunpack.c.l.b16 %v361
        %v465 = vunpack.c.h.b16 %v361
        %v466 = vunpack.c.l.b16 %v362
        %v467 = vunpack.c.l.b16 %v363
        %v468 = vunpack.c.h.b16 %v363
        %v469 = vunpack.c.l.b16 %v364
        %v470 = vunpack.c.l.b16 %v365
        %v471 = vunpack.c.h.b16 %v365
        %v472 = vunpack.c.l.b16 %v366
        %v473 = vunpack.c.l.b16 %v367
        %v474 = vunpack.c.h.b16 %v367
        %v475 = vunpack.c.l.b16 %v368
        %v476 = vunpack.c.l.b16 %v369
        %v477 = vunpack.c.h.b16 %v369
        %v478 = vunpack.c.l.b16 %v370
        %v479 = vunpack.c.l.b16 %v371
        %v480 = vunpack.c.h.b16 %v371
        %v481 = vunpack.c.l.b16 %v372
        %v482 = vpack.c.b16 %v437, %v434
        %v483 = vpack.c.b16 %v438, %v435
        %v484 = vpack.c.b16 %v439, %v436
        %v485 = vpack.c.b16 %v443, %v440
        %v486 = vpack.c.b16 %v444, %v441
        %v487 = vpack.c.b16 %v445, %v442
        %v488 = vpack.c.b16 %v449, %v446
        %v489 = vpack.c.b16 %v450, %v447
        %v490 = vpack.c.b16 %v451, %v448
        %v491 = vpack.c.b16 %v455, %v452
        %v492 = vpack.c.b16 %v456, %v453
        %v493 = vpack.c.b16 %v457, %v454
        %v494 = vpack.c.b16 %v461, %v458
        %v495 = vpack.c.b16 %v462, %v459
        %v496 = vpack.c.b16 %v463, %v460
        %v497 = vpack.c.b16 %v467, %v464
        %v498 = vpack.c.b16 %v468, %v465
        %v499 = vpack.c.b16 %v469, %v466
        %v500 = vpack.c.b16 %v473, %v470
        %v501 = vpack.c.b16 %v474, %v471
        %v502 = vpack.c.b16 %v475, %v472
        %v503 = vpack.c.b16 %v479, %v476
        %v504 = vpack.c.b16 %v480, %v477
        %v505 = vpack.c.b16 %v481, %v478
        %530 = vmatprep.subr.bf16.mxu0 %v483
        %531 = vmatpush1.bf16.msra.mxu0 %v482
        %532 = vmatprep.subr.bf16.mxu0 %v486
        %533 = vmatpush1.bf16.msra.mxu0 %v485
        %534 = vmatprep.subr.bf16.mxu0 %v489
        %535 = vmatpush1.bf16.msra.mxu0 %v488
        %536 = vmatprep.subr.bf16.mxu0 %v492
        %537 = vmatpush1.bf16.msra.mxu0 %v491
        %538 = vmatprep.subr.bf16.mxu0 %v495
        %539 = vmatpush1.bf16.msra.mxu0 %v494
        %540 = vmatprep.subr.bf16.mxu0 %v498
        %541 = vmatpush1.bf16.msra.mxu0 %v497
        %542 = vmatprep.subr.bf16.mxu0 %v501
        %543 = vmatpush1.bf16.msra.mxu0 %v500
        %544 = vmatprep.subr.bf16.mxu0 %v504
        %545 = vmatpush1.bf16.msra.mxu0 %v503
        %546 = vmatprep.subr.bf16.mxu0 0
        %547 = vmatpush1.bf16.msra.mxu0 0
        %548 = vmatprep.subr.bf16.mxu0 0
        %549 = vmatpush1.bf16.msra.mxu0 0
        %550 = vmatprep.subr.bf16.mxu0 0
        %551 = vmatpush1.bf16.msra.mxu0 0
        %552 = vmatprep.subr.bf16.mxu0 0
        %553 = vmatpush1.bf16.msra.mxu0 0
        %554 = vmatprep.subr.bf16.mxu0 0
        %555 = vmatpush1.bf16.msra.mxu0 0
        %556 = vmatprep.subr.bf16.mxu0 0
        %557 = vmatpush1.bf16.msra.mxu0 0
        %558 = vmatprep.subr.bf16.mxu0 0
        %559 = vmatpush1.bf16.msra.mxu0 0
        %560 = vmatprep.subr.bf16.mxu0 0
        %561 = vmatpush1.bf16.msra.mxu0 0
        %562 = vmatprep.mubr.bf16.mxu0 0
        %563 = vmatmul.mubr.bf16.gmra.mrb[0].mxu0 %v338
        %v564 = vpop.f32.mrb[0].mxu0
        %v565 = vadd.f32 %v393, %v564
        %v566 = vpop.f32.mrb[0].mxu0
        %v567 = vadd.f32 %v397, %v566
        %v568 = vpop.f32.mrb[0].mxu0
        %v569 = vadd.f32 %v393, %v568
        %v570 = vpop.f32.mrb[0].mxu0
        %v571 = vadd.f32 %v397, %v570
        %572 = vdwg.mxu0
        %573 = vmatprep.subr.bf16.mxu0 0
        %574 = vmatpush1.bf16.msra.mxu0 %v484
        %575 = vmatprep.subr.bf16.mxu0 0
        %576 = vmatpush1.bf16.msra.mxu0 %v487
        %577 = vmatprep.subr.bf16.mxu0 0
        %578 = vmatpush1.bf16.msra.mxu0 %v490
        %579 = vmatprep.subr.bf16.mxu0 0
        %580 = vmatpush1.bf16.msra.mxu0 %v493
        %581 = vmatprep.subr.bf16.mxu0 0
        %582 = vmatpush1.bf16.msra.mxu0 %v496
        %583 = vmatprep.subr.bf16.mxu0 0
        %584 = vmatpush1.bf16.msra.mxu0 %v499
        %585 = vmatprep.subr.bf16.mxu0 0
        %586 = vmatpush1.bf16.msra.mxu0 %v502
        %587 = vmatprep.subr.bf16.mxu0 0
        %588 = vmatpush1.bf16.msra.mxu0 %v505
        %589 = vmatprep.subr.bf16.mxu0 0
        %590 = vmatpush1.bf16.msra.mxu0 0
        %591 = vmatprep.subr.bf16.mxu0 0
        %592 = vmatpush1.bf16.msra.mxu0 0
        %593 = vmatprep.subr.bf16.mxu0 0
        %594 = vmatpush1.bf16.msra.mxu0 0
        %595 = vmatprep.subr.bf16.mxu0 0
        %596 = vmatpush1.bf16.msra.mxu0 0
        %597 = vmatprep.subr.bf16.mxu0 0
        %598 = vmatpush1.bf16.msra.mxu0 0
        %599 = vmatprep.subr.bf16.mxu0 0
        %600 = vmatpush1.bf16.msra.mxu0 0
        %601 = vmatprep.subr.bf16.mxu0 0
        %602 = vmatpush1.bf16.msra.mxu0 0
        %603 = vmatprep.subr.bf16.mxu0 0
        %604 = vmatpush1.bf16.msra.mxu0 0
        %605 = vmatprep.mubr.bf16.mxu0 0
        %606 = vmatmul.mubr.bf16.gmra.mrb[0].mxu0 %v338
        %v607 = vpop.f32.mrb[0].mxu0
        %v608 = vadd.f32 %v401, %v607
        %v609 = vpop.f32.mrb[0].mxu0
        %v610 = vpop.f32.mrb[0].mxu0
        %v611 = vadd.f32 %v401, %v610
        %v612 = vpop.f32.mrb[0].mxu0
        %613 = vdwg.mxu0
        %v614 = vlaneseq
        %v615 = vshrl.u32 %v614, 7
        %v616 = vsub.s32 1, %v615
        %v617 = vrot.slane %v339, %v616
        %v618 = vlaneseq
        %v619 = vshrl.u32 %v618, 7
        %v620 = vsub.s32 5, %v619
        %v621 = vrot.slane %v339, %v620
        %v622 = vlaneseq
        %v623 = vshrl.u32 %v622, 7
        %v624 = vsub.s32 1, %v623
        %v625 = vrot.slane %v340, %v624
        %v629 = vlaneseq
        %v630 = vshrl.u32 %v629, 7
        %v631 = vsub.s32 1, %v630
        %v632 = vrot.slane %v617, %v631
        %v633 = vlaneseq
        %v634 = vshrl.u32 %v633, 7
        %v635 = vsub.s32 1, %v634
        %v636 = vrot.slane %v621, %v635
        %v637 = vlaneseq
        %v638 = vshrl.u32 %v637, 7
        %v639 = vsub.s32 1, %v638
        %v640 = vrot.slane %v625, %v639
        %v641 = vmul.f32 %v565, %v632
        %v642 = vmul.f32 %v567, %v636
        %v643 = vmul.f32 %v608, %v640
        %v644 = vmul.f32 %v569, %v632
        %v645 = vmul.f32 %v571, %v636
        %v646 = vmul.f32 %v611, %v640
        %v647 = vlaneseq
        %v648 = vshrl.u32 %v647, 7
        %v649 = vsub.s32 2, %v648
        %v650 = vrot.slane %v339, %v649
        %v651 = vlaneseq
        %v652 = vshrl.u32 %v651, 7
        %v653 = vsub.s32 6, %v652
        %v654 = vrot.slane %v339, %v653
        %v655 = vlaneseq
        %v656 = vshrl.u32 %v655, 7
        %v657 = vsub.s32 2, %v656
        %v658 = vrot.slane %v340, %v657
        %v662 = vlaneseq
        %v663 = vshrl.u32 %v662, 7
        %v664 = vsub.s32 2, %v663
        %v665 = vrot.slane %v650, %v664
        %v666 = vlaneseq
        %v667 = vshrl.u32 %v666, 7
        %v668 = vsub.s32 2, %v667
        %v669 = vrot.slane %v654, %v668
        %v670 = vlaneseq
        %v671 = vshrl.u32 %v670, 7
        %v672 = vsub.s32 2, %v671
        %v673 = vrot.slane %v658, %v672
        %v674 = vadd.f32 %v641, %v665
        %v675 = vadd.f32 %v642, %v669
        %v676 = vadd.f32 %v643, %v673
        %v677 = vadd.f32 %v644, %v665
        %v678 = vadd.f32 %v645, %v669
        %v679 = vadd.f32 %v646, %v673
        %v680 = vxor.u32 %v674, 2147483648
        %v681 = vxor.u32 %v675, 2147483648
        %v682 = vxor.u32 %v676, 2147483648
        %v683 = vxor.u32 %v677, 2147483648
        %v684 = vxor.u32 %v678, 2147483648
        %v685 = vxor.u32 %v679, 2147483648
        %v686 = vmul.f32 %v680, 1.442695
        %v687 = vpow.pop %v686
        %v688 = vmul.f32 %v681, 1.442695
        %v689 = vpow.pop %v688
        %v690 = vmul.f32 %v682, 1.442695
        %v691 = vpow.pop %v690
        %v692 = vmul.f32 %v683, 1.442695
        %v693 = vpow.pop %v692
        %v694 = vmul.f32 %v684, 1.442695
        %v695 = vpow.pop %v694
        %v696 = vmul.f32 %v685, 1.442695
        %v697 = vpow.pop %v696
        %v698 = vadd.f32 %v687, 1.0
        %v699 = vadd.f32 %v689, 1.0
        %v700 = vadd.f32 %v691, 1.0
        %v701 = vadd.f32 %v693, 1.0
        %v702 = vadd.f32 %v695, 1.0
        %v703 = vadd.f32 %v697, 1.0
        %v704 = vrcp.pop %v698
        %v705 = vmul.f32 1.0, %v704
        %v706 = vrcp.pop %v699
        %v707 = vmul.f32 1.0, %v706
        %v708 = vrcp.pop %v700
        %v709 = vmul.f32 1.0, %v708
        %v710 = vrcp.pop %v701
        %v711 = vmul.f32 1.0, %v710
        %v712 = vrcp.pop %v702
        %v713 = vmul.f32 1.0, %v712
        %v714 = vrcp.pop %v703
        %v715 = vmul.f32 1.0, %v714
        %v716 = vmul.f32 %v565, %v705
        %v717 = vmul.f32 %v567, %v707
        %v718 = vmul.f32 %v608, %v709
        %v719 = vmul.f32 %v569, %v711
        %v720 = vmul.f32 %v571, %v713
        %v721 = vmul.f32 %v611, %v715
        %v722 = vpack.c.bf16 %v719, %v716
        %v723 = vpack.c.bf16 %v720, %v717
        %v724 = vld [vmem:[%s285] sm:$0xff]
        %v725 = vld [vmem:[%s285 + $0x8] sm:$0xff]
        %v726 = vpack.c.bf16 %v725, %v724
        %v727 = vld [vmem:[%s294] sm:$0xff]
        %v728 = vld [vmem:[%s294 + $0x8] sm:$0xff]
        %v729 = vpack.c.bf16 %v728, %v727
        %vm730 = vcmask 130048
        %v732 = vsel %vm730, %v729, 0
        %734 = vmatprep.subr.bf16.mxu0 0
        %735 = vmatpush1.bf16.msra.mxu0 %v723
        %736 = vmatprep.subr.bf16.mxu0 0
        %737 = vmatpush1.bf16.msra.mxu0 0
        %738 = vmatprep.subr.bf16.mxu0 0
        %739 = vmatpush1.bf16.msra.mxu0 0
        %740 = vmatprep.subr.bf16.mxu0 0
        %741 = vmatpush1.bf16.msra.mxu0 0
        %742 = vmatprep.subr.bf16.mxu0 0
        %743 = vmatpush1.bf16.msra.mxu0 0
        %744 = vmatprep.subr.bf16.mxu0 0
        %745 = vmatpush1.bf16.msra.mxu0 0
        %746 = vmatprep.subr.bf16.mxu0 0
        %747 = vmatpush1.bf16.msra.mxu0 0
        %748 = vmatprep.subr.bf16.mxu0 0
        %749 = vmatpush1.bf16.msra.mxu0 0
        %750 = vmatprep.subr.bf16.mxu0 0
        %751 = vmatpush1.bf16.msra.mxu0 0
        %752 = vmatprep.subr.bf16.mxu0 0
        %753 = vmatpush1.bf16.msra.mxu0 0
        %754 = vmatprep.subr.bf16.mxu0 0
        %755 = vmatpush1.bf16.msra.mxu0 0
        %756 = vmatprep.subr.bf16.mxu0 0
        %757 = vmatpush1.bf16.msra.mxu0 0
        %758 = vmatprep.subr.bf16.mxu0 0
        %759 = vmatpush1.bf16.msra.mxu0 0
        %760 = vmatprep.subr.bf16.mxu0 0
        %761 = vmatpush1.bf16.msra.mxu0 0
        %762 = vmatprep.subr.bf16.mxu0 0
        %763 = vmatpush1.bf16.msra.mxu0 0
        %764 = vmatprep.subr.bf16.mxu0 0
        %765 = vmatpush1.bf16.msra.mxu0 0
        %766 = vmatprep.mubr.bf16.mxu0 0
        %767 = vmatmul.mubr.bf16.gmra.mrb[0].mxu0 %v732
        %v768 = vpop.f32.mrb[0].mxu0
        %v769 = vadd.f32 0.0, %v768
        %v770 = vpop.f32.mrb[0].mxu0
        %v771 = vpop.f32.mrb[0].mxu0
        %v772 = vadd.f32 0.0, %v771
        %v773 = vpop.f32.mrb[0].mxu0
        %774 = vdwg.mxu0
        %v776 = vsel %vm730, %v726, 0
        %778 = vmatprep.subr.bf16.mxu0 0
        %779 = vmatpush1.bf16.msra.mxu0 %v722
        %780 = vmatprep.subr.bf16.mxu0 0
        %781 = vmatpush1.bf16.msra.mxu0 0
        %782 = vmatprep.subr.bf16.mxu0 0
        %783 = vmatpush1.bf16.msra.mxu0 0
        %784 = vmatprep.subr.bf16.mxu0 0
        %785 = vmatpush1.bf16.msra.mxu0 0
        %786 = vmatprep.subr.bf16.mxu0 0
        %787 = vmatpush1.bf16.msra.mxu0 0
        %788 = vmatprep.subr.bf16.mxu0 0
        %789 = vmatpush1.bf16.msra.mxu0 0
        %790 = vmatprep.subr.bf16.mxu0 0
        %791 = vmatpush1.bf16.msra.mxu0 0
        %792 = vmatprep.subr.bf16.mxu0 0
        %793 = vmatpush1.bf16.msra.mxu0 0
        %794 = vmatprep.subr.bf16.mxu0 0
        %795 = vmatpush1.bf16.msra.mxu0 0
        %796 = vmatprep.subr.bf16.mxu0 0
        %797 = vmatpush1.bf16.msra.mxu0 0
        %798 = vmatprep.subr.bf16.mxu0 0
        %799 = vmatpush1.bf16.msra.mxu0 0
        %800 = vmatprep.subr.bf16.mxu0 0
        %801 = vmatpush1.bf16.msra.mxu0 0
        %802 = vmatprep.subr.bf16.mxu0 0
        %803 = vmatpush1.bf16.msra.mxu0 0
        %804 = vmatprep.subr.bf16.mxu0 0
        %805 = vmatpush1.bf16.msra.mxu0 0
        %806 = vmatprep.subr.bf16.mxu0 0
        %807 = vmatpush1.bf16.msra.mxu0 0
        %808 = vmatprep.subr.bf16.mxu0 0
        %809 = vmatpush1.bf16.msra.mxu0 0
        %810 = vmatprep.mubr.bf16.mxu0 0
        %811 = vmatmul.mubr.bf16.gmra.mrb[0].mxu0 %v776
        %v812 = vpop.f32.mrb[0].mxu0
        %v813 = vadd.f32 %v769, %v812
        %v814 = vpop.f32.mrb[0].mxu0
        %v815 = vpop.f32.mrb[0].mxu0
        %v816 = vadd.f32 %v772, %v815
        %v817 = vpop.f32.mrb[0].mxu0
        %818 = vdwg.mxu0
        %v819 = vadd.f32 %v813, %v718
        %v820 = vadd.f32 %v816, %v721
        %821 = vst [vmem:[%s334] sm:$0xff] %v819
        %822 = vst [vmem:[%s334 + $0x8] sm:$0xff] %v820
        %s823 = sand.u32 %s154, 1
        %s824 = scalar_lea.sflag [#allocation4], %s823
        %s825 = sand.u32 %s154, 1
        %s826 = smul.addr %s825, 16
        %s827 = scalar_lea.vmem [#allocation10], %s826
        // Predicated region
        $region57: #{tpu_custom_call.1} parent=39 // pred_check
          %p828 = pneg %p164
        $region58: #{tpu_custom_call.1} parent=39 // pred_check_branch
          %830 = sbr.rel (%p828) target = $region60
        $region59: #{tpu_custom_call.1} parent=39 // pred_region
          %s832 = ssub.s32 256, 256
          %833 = vsyncadd %s824, %s832
          %s834 = smul.addr %s26, 2
          %s835 = smul.addr %s834, 128
          %s836 = scalar_lea.hbm %s5, %s835
          %s837 = sshll.u32 %s827, 4
          %s838 = int_to_ptr.vmem [resolvable:$true] %s837
          %843 = dma.vmem_to_hbm [thread:$0]  %s838, 256, %s836, %s824, 128, 128, 8
        $region60: #{tpu_custom_call.1} parent=39 // pred_fallthru
          _
      $region40: #{tpu_custom_call.1} parent=5 // pred_fallthru
        _
      %p844 = scmp.le.s32.totalorder 2, %s21
      // Predicated region
      $region61: #{tpu_custom_call.1} parent=5 // pred_check
        %p845 = pneg %p844
      $region62: #{tpu_custom_call.1} parent=5 // pred_check_branch
        %847 = sbr.rel (%p845) target = $region64
      $region63: #{tpu_custom_call.1} parent=5 // pred_region
        %s848 = ssub.s32 %s21, 2
        // Predicated region
        $region65: #{tpu_custom_call.1} parent=63 // pred_check
          %p849 = pneg %p170
        $region66: #{tpu_custom_call.1} parent=63 // pred_check_branch
          %851 = sbr.rel (%p849) target = $region68
        $region67: #{tpu_custom_call.1} parent=63 // pred_region
          %s852 = sand.u32 %s155, 1
          %s853 = scalar_lea.sflag [#allocation4], %s852
          %s854 = sand.u32 %s155, 1
          %s855 = smul.addr %s854, 16
          %s856 = scalar_lea.vmem [#allocation10], %s855
          %857 = dma.done %s853, 256
        $region68: #{tpu_custom_call.1} parent=63 // pred_fallthru
          _
      $region64: #{tpu_custom_call.1} parent=5 // pred_fallthru
        _
    $region6: #{tpu_custom_call.1} parent=1 // loop_footer
      %s25 = sadd.s32 1, %s21
    $region7: #{tpu_custom_call.1} parent=1 // loop_footer_branch
      %20 = sbr.rel target = $region3
    $region8: #{tpu_custom_call.1} parent=1 // loop_exit
      _
    %858 = vsyncpa [#allocation3], 1
    %s859 = scalar_lea.sflag [#allocation3], 1
    %860 = vsyncpa %s859, 1
    %861 = vsyncpa [#allocation6], 1
    %s862 = scalar_lea.sflag [#allocation6], 1
    %863 = vsyncpa %s862, 1
    %864 = vsyncpa [#allocation9], 1
    %865 = vsyncpa [#allocation4], 1
    %s866 = scalar_lea.sflag [#allocation4], 1
    %867 = vsyncpa %s866, 1

// kernel: tpu_custom_call.1
$region0: #{tpu_custom_call.1}
  #allocation0 [shape = 'u32[]', space=smem, size = 0x4, offset = 0x4, fixed_abs, tag = 'smem constant byte address 0x4 - core index']
  #allocation1 [shape = 'u32[144,128]{1,0:T(1,128)}', space=vmem, size = 0x12000, scoped, tag = 'internal scratch']
  %s0 = inlined_call_operand.hbm [shape: f32[2,16,128], index: 0, kind: input, shape index: {}]
  %s1 = inlined_call_operand.hbm [shape: f32[2,16,16], index: 1, kind: input, shape index: {}]
  %s2 = inlined_call_operand.hbm [shape: f32[2,16,16], index: 2, kind: input, shape index: {}]
  %s3 = inlined_call_operand.hbm [shape: bf16[128,384], index: 3, kind: input, shape index: {}]
  %s4 = inlined_call_operand.vmem [shape: f32[3,384], index: 4, kind: input, shape index: {}]
  %s5 = inlined_call_operand.hbm [shape: f32[2,16,128], index: 5, kind: output, shape index: {}]
  %s6 = sld [smem:[#allocation0]]
  $region69: #{tpu_custom_call.1} parent=0
    _
  %s8 = ssub.s32 1, %s6
  %s9 = scalar_select 0, %s8, %s6
  $region1: #{tpu_custom_call.1} parent=0
    #allocation2 [shape = 'u8[16384]{0}', space=vmem, size = 0x4000, scoped, tag = 'input window, operand 0']
    #allocation3 [shape = 's32[2]{0}', space=sflag, size = 0x8, scoped, tag = 'scoped memory for tpu_custom_call.1']
    #allocation4 [shape = 's32[2]{0}', space=sflag, size = 0x8, scoped, tag = 'scoped memory for tpu_custom_call.1']
    #allocation5 [shape = 'u8[16384]{0}', space=vmem, size = 0x4000, scoped, tag = 'input window, operand 1']
    #allocation6 [shape = 's32[2]{0}', space=sflag, size = 0x8, scoped, tag = 'scoped memory for tpu_custom_call.1']
    #allocation7 [shape = 'u8[16384]{0}', space=vmem, size = 0x4000, scoped, tag = 'input window, operand 2']
    #allocation8 [shape = 'u8[98304]{0}', space=vmem, size = 0x18000, scoped, tag = 'input window, operand 3, single buffered']
    #allocation9 [shape = 's32[1]{0}', space=sflag, size = 0x4, scoped, tag = 'scoped memory for tpu_custom_call.1']
    #allocation10 [shape = 'u8[16384]{0}', space=vmem, size = 0x4000, scoped, tag = 'output window, operand 0']
    %10 = vsyncpa [#allocation3], 0
    %s11 = scalar_lea.sflag [#allocation3], 1
    %12 = vsyncpa %s11, 0
    %13 = vsyncpa [#allocation6], 0
    %s14 = scalar_lea.sflag [#allocation6], 1
    %15 = vsyncpa %s14, 0
    %16 = vsyncpa [#allocation9], 0
    %17 = vsyncpa [#allocation4], 0
    %s18 = scalar_lea.sflag [#allocation4], 1
    %19 = vsyncpa %s18, 0
    loop: start=0, step=1, limit=4
    $region2: #{tpu_custom_call.1} parent=1 // loop_pre_header
      _
    $region3: #{tpu_custom_call.1} parent=1 // loop_header
      %s21 = sphi 0, %s25
      %p22 = scmp.ge.s32.totalorder %s21, 4
      %s31 = sphi 0, %s33
      %s34 = sphi 0, %s31
      %s35 = sphi 0, %s34
      %s51 = sphi 0, %s35
      %s57 = sphi 0, %s59
      %s60 = sphi 0, %s57
      %s61 = sphi 0, %s60
      %s77 = sphi 0, %s61
      %s83 = sphi 0, %s85
      %s86 = sphi 0, %s83
      %s87 = sphi 0, %s86
      %s103 = sphi 0, %s87
      %s107 = sphi 0, %s107
      %s109 = sphi 0, %s107
      %s110 = sphi 0, %s109
      %s124 = sphi 0, %s110
      %s128 = sphi 0, %s128
      %s130 = sphi 0, %s128
      %s131 = sphi 0, %s130
      %s145 = sphi 0, %s131
      %s151 = sphi 0, %s153
      %s154 = sphi 0, %s151
      %s155 = sphi 0, %s154
      %s171 = sphi 0, %s155
    $region4: #{tpu_custom_call.1} parent=1 // loop_header_branch
      %24 = sbr.rel (%p22) target = $region8
    $region5: #{tpu_custom_call.1} parent=1 // loop_body
      %s26 = ssub.s32 %s21, 1
      %s27 = ssub.s32 %s21, 2
      %s28 = sadd.s32 %s21, 1
      %s29 = ssub.s32 %s21, %s28
      %p30 = scmp.eq.s32.totalorder %s29, 0
      %s32 = sadd.s32 %s31, 1
      %s33 = scalar_select %p30, %s31, %s32
      %p36 = pneg %p30
      %p37 = scmp.eq.s32.totalorder %s21, 1
      %p38 = por %p36, %p37
      %p39 = scmp.ne.s32.totalorder %s31, %s34
      %p40 = scmp.eq.s32.totalorder %s21, 0
      %p41 = por %p39, %p40
      %p42 = scmp.ne.s32.totalorder %s31, %s34
      %p43 = scmp.eq.s32.totalorder %s26, 1
      %p44 = por %p42, %p43
      %p45 = scmp.ne.s32.totalorder %s34, %s35
      %p46 = scmp.eq.s32.totalorder %s26, 0
      %p47 = por %p45, %p46
      %p48 = scmp.ne.s32.totalorder %s34, %s35
      %p49 = scmp.eq.s32.totalorder %s27, 1
      %p50 = por %p48, %p49
      %p52 = scmp.ne.s32.totalorder %s35, %s51
      %p53 = scmp.eq.s32.totalorder %s27, 0
      %p54 = por %p52, %p53
      %s55 = ssub.s32 %s21, %s28
      %p56 = scmp.eq.s32.totalorder %s55, 0
      %s58 = sadd.s32 %s57, 1
      %s59 = scalar_select %p56, %s57, %s58
      %p62 = pneg %p56
      %p63 = scmp.eq.s32.totalorder %s21, 1
      %p64 = por %p62, %p63
      %p65 = scmp.ne.s32.totalorder %s57, %s60
      %p66 = scmp.eq.s32.totalorder %s21, 0
      %p67 = por %p65, %p66
      %p68 = scmp.ne.s32.totalorder %s57, %s60
      %p69 = scmp.eq.s32.totalorder %s26, 1
      %p70 = por %p68, %p69
      %p71 = scmp.ne.s32.totalorder %s60, %s61
      %p72 = scmp.eq.s32.totalorder %s26, 0
      %p73 = por %p71, %p72
      %p74 = scmp.ne.s32.totalorder %s60, %s61
      %p75 = scmp.eq.s32.totalorder %s27, 1
      %p76 = por %p74, %p75
      %p78 = scmp.ne.s32.totalorder %s61, %s77
      %p79 = scmp.eq.s32.totalorder %s27, 0
      %p80 = por %p78, %p79
      %s81 = ssub.s32 %s21, %s28
      %p82 = scmp.eq.s32.totalorder %s81, 0
      %s84 = sadd.s32 %s83, 1
      %s85 = scalar_select %p82, %s83, %s84
      %p88 = pneg %p82
      %p89 = scmp.eq.s32.totalorder %s21, 1
      %p90 = por %p88, %p89
      %p91 = scmp.ne.s32.totalorder %s83, %s86
      %p92 = scmp.eq.s32.totalorder %s21, 0
      %p93 = por %p91, %p92
      %p94 = scmp.ne.s32.totalorder %s83, %s86
      %p95 = scmp.eq.s32.totalorder %s26, 1
      %p96 = por %p94, %p95
      %p97 = scmp.ne.s32.totalorder %s86, %s87
      %p98 = scmp.eq.s32.totalorder %s26, 0
      %p99 = por %p97, %p98
      %p100 = scmp.ne.s32.totalorder %s86, %s87
      %p101 = scmp.eq.s32.totalorder %s27, 1
      %p102 = por %p100, %p101
      %p104 = scmp.ne.s32.totalorder %s87, %s103
      %p105 = scmp.eq.s32.totalorder %s27, 0
      %p106 = por %p104, %p105
      %s108 = sadd.s32 %s107, 1
      %p111 = scmp.eq.s32.totalorder %s21, 1
      %p112 = scmp.ne.s32.totalorder %s107, %s109
      %p113 = scmp.eq.s32.totalorder %s21, 0
      %p114 = por %p112, %p113
      %p115 = scmp.ne.s32.totalorder %s107, %s109
      %p116 = scmp.eq.s32.totalorder %s26, 1
      %p117 = por %p115, %p116
      %p118 = scmp.ne.s32.totalorder %s109, %s110
      %p119 = scmp.eq.s32.totalorder %s26, 0
      %p120 = por %p118, %p119
      %p121 = scmp.ne.s32.totalorder %s109, %s110
      %p122 = scmp.eq.s32.totalorder %s27, 1
      %p123 = por %p121, %p122
      %p125 = scmp.ne.s32.totalorder %s110, %s124
      %p126 = scmp.eq.s32.totalorder %s27, 0
      %p127 = por %p125, %p126
      %s129 = sadd.s32 %s128, 1
      %p132 = scmp.eq.s32.totalorder %s21, 1
      %p133 = scmp.ne.s32.totalorder %s128, %s130
      %p134 = scmp.eq.s32.totalorder %s21, 0
      %p135 = por %p133, %p134
      %p136 = scmp.ne.s32.totalorder %s128, %s130
      %p137 = scmp.eq.s32.totalorder %s26, 1
      %p138 = por %p136, %p137
      %p139 = scmp.ne.s32.totalorder %s130, %s131
      %p140 = scmp.eq.s32.totalorder %s26, 0
      %p141 = por %p139, %p140
      %p142 = scmp.ne.s32.totalorder %s130, %s131
      %p143 = scmp.eq.s32.totalorder %s27, 1
      %p144 = por %p142, %p143
      %p146 = scmp.ne.s32.totalorder %s131, %s145
      %p147 = scmp.eq.s32.totalorder %s27, 0
      %p148 = por %p146, %p147
      %s149 = ssub.s32 %s21, %s28
      %p150 = scmp.eq.s32.totalorder %s149, 0
      %s152 = sadd.s32 %s151, 1
      %s153 = scalar_select %p150, %s151, %s152
      %p156 = pneg %p150
      %p157 = scmp.eq.s32.totalorder %s21, 1
      %p158 = por %p156, %p157
      %p159 = scmp.ne.s32.totalorder %s151, %s154
      %p160 = scmp.eq.s32.totalorder %s21, 0
      %p161 = por %p159, %p160
      %p162 = scmp.ne.s32.totalorder %s151, %s154
      %p163 = scmp.eq.s32.totalorder %s26, 1
      %p164 = por %p162, %p163
      %p165 = scmp.ne.s32.totalorder %s154, %s155
      %p166 = scmp.eq.s32.totalorder %s26, 0
      %p167 = por %p165, %p166
      %p168 = scmp.ne.s32.totalorder %s154, %s155
      %p169 = scmp.eq.s32.totalorder %s27, 1
      %p170 = por %p168, %p169
      %p172 = scmp.ne.s32.totalorder %s155, %s171
      %p173 = scmp.eq.s32.totalorder %s27, 0
      %p174 = por %p172, %p173
      %p175 = scmp.le.s32.totalorder 1, %s21
      %p176 = scmp.lt.s32.totalorder %s21, 3
      %p177 = pnand %p175, %p176
      %p178 = pneg %p177
      // Predicated region
      $region9: #{tpu_custom_call.1} parent=5 // pred_check
        _
      $region10: #{tpu_custom_call.1} parent=5 // pred_check_branch
        %180 = sbr.rel (%p177) target = $region12
      $region11: #{tpu_custom_call.1} parent=5 // pred_region
        %s181 = ssub.s32 %s21, 1
        // Predicated region
        $region13: #{tpu_custom_call.1} parent=11 // pred_check
          %p182 = pneg %p120
        $region14: #{tpu_custom_call.1} parent=11 // pred_check_branch
          %184 = sbr.rel (%p182) target = $region16
        $region15: #{tpu_custom_call.1} parent=11 // pred_region
          %s186 = ssub.s32 3072, 3072
          %187 = vsyncadd [#allocation9], %s186
          %s188 = sshll.u32 [#allocation8], 4
          %s189 = int_to_ptr.vmem [resolvable:$true] %s188
          %194 = dma.hbm_to_vmem [thread:$0]  %s3, 3072, %s189, [#allocation9], 192, 192, 12
        $region16: #{tpu_custom_call.1} parent=11 // pred_fallthru
          _
        // Predicated region
        $region17: #{tpu_custom_call.1} parent=11 // pred_check
          %p195 = pneg %p141
        $region18: #{tpu_custom_call.1} parent=11 // pred_check_branch
          %197 = sbr.rel (%p195) target = $region20
        $region19: #{tpu_custom_call.1} parent=11 // pred_region
          _
        $region20: #{tpu_custom_call.1} parent=11 // pred_fallthru
          _
      $region12: #{tpu_custom_call.1} parent=5 // pred_fallthru
        _
      %p198 = scmp.lt.s32.totalorder %s21, 2
      // Predicated region
      $region21: #{tpu_custom_call.1} parent=5 // pred_check
        %p199 = pneg %p198
      $region22: #{tpu_custom_call.1} parent=5 // pred_check_branch
        %201 = sbr.rel (%p199) target = $region24
      $region23: #{tpu_custom_call.1} parent=5 // pred_region
        // Predicated region
        $region25: #{tpu_custom_call.1} parent=23 // pred_check
          %p202 = pneg %p41
        $region26: #{tpu_custom_call.1} parent=23 // pred_check_branch
          %204 = sbr.rel (%p202) target = $region28
        $region27: #{tpu_custom_call.1} parent=23 // pred_region
          %s205 = sand.u32 %s31, 1
          %s206 = scalar_lea.sflag [#allocation3], %s205
          %s207 = sand.u32 %s31, 1
          %s208 = smul.addr %s207, 16
          %s209 = scalar_lea.vmem [#allocation2], %s208
          %s211 = ssub.s32 256, 256
          %212 = vsyncadd %s206, %s211
          %s213 = smul.addr %s21, 2
          %s214 = smul.addr %s213, 128
          %s215 = scalar_lea.hbm %s0, %s214
          %s216 = sshll.u32 %s209, 4
          %s217 = int_to_ptr.vmem [resolvable:$true] %s216
          %222 = dma.hbm_to_vmem [thread:$0]  %s215, 256, %s217, %s206, 128, 128, 8
        $region28: #{tpu_custom_call.1} parent=23 // pred_fallthru
          _
        // Predicated region
        $region29: #{tpu_custom_call.1} parent=23 // pred_check
          %p223 = pneg %p67
        $region30: #{tpu_custom_call.1} parent=23 // pred_check_branch
          %225 = sbr.rel (%p223) target = $region32
        $region31: #{tpu_custom_call.1} parent=23 // pred_region
          %s226 = sand.u32 %s21, 1
          %s227 = scalar_lea.sflag [#allocation6], %s226
          %s228 = sand.u32 %s57, 1
          %s229 = smul.addr %s228, 16
          %s230 = scalar_lea.vmem [#allocation5], %s229
          %s232 = ssub.s32 256, 256
          %233 = vsyncadd %s227, %s232
          %s234 = smul.addr %s21, 2
          %s235 = smul.addr %s234, 128
          %s236 = scalar_lea.hbm %s1, %s235
          %s237 = sshll.u32 %s230, 4
          %s238 = int_to_ptr.vmem [resolvable:$true] %s237
          %243 = dma.hbm_to_vmem [thread:$0]  %s236, 256, %s238, %s227, 128, 128, 8
        $region32: #{tpu_custom_call.1} parent=23 // pred_fallthru
          _
        // Predicated region
        $region33: #{tpu_custom_call.1} parent=23 // pred_check
          %p244 = pneg %p93
        $region34: #{tpu_custom_call.1} parent=23 // pred_check_branch
          %246 = sbr.rel (%p244) target = $region36
        $region35: #{tpu_custom_call.1} parent=23 // pred_region
          %s247 = sand.u32 %s21, 1
          %s248 = scalar_lea.sflag [#allocation6], %s247
          %s249 = sand.u32 %s83, 1
          %s250 = smul.addr %s249, 16
          %s251 = scalar_lea.vmem [#allocation7], %s250
          %s253 = ssub.s32 256, 256
          %254 = vsyncadd %s248, %s253
          %s255 = smul.addr %s21, 2
          %s256 = smul.addr %s255, 128
          %s257 = scalar_lea.hbm %s2, %s256
          %s258 = sshll.u32 %s251, 4
          %s259 = int_to_ptr.vmem [resolvable:$true] %s258
          %264 = dma.hbm_to_vmem [thread:$0]  %s257, 256, %s259, %s248, 128, 128, 8
        $region36: #{tpu_custom_call.1} parent=23 // pred_fallthru
          _
      $region24: #{tpu_custom_call.1} parent=5 // pred_fallthru
        _
      %p265 = scmp.le.s32.totalorder 1, %s21
      %p266 = scmp.lt.s32.totalorder %s21, 3
      %p267 = pnand %p265, %p266
      %p268 = pneg %p267
      // Predicated region
      $region37: #{tpu_custom_call.1} parent=5 // pred_check
        _
      $region38: #{tpu_custom_call.1} parent=5 // pred_check_branch
        %270 = sbr.rel (%p267) target = $region40
      $region39: #{tpu_custom_call.1} parent=5 // pred_region
        %s271 = ssub.s32 %s21, 1
        %s272 = sand.u32 %s34, 1
        %s273 = scalar_lea.sflag [#allocation3], %s272
        %s274 = sand.u32 %s34, 1
        %s275 = smul.addr %s274, 16
        %s276 = scalar_lea.vmem [#allocation2], %s275
        // Predicated region
        $region41: #{tpu_custom_call.1} parent=39 // pred_check
          %p277 = pneg %p47
        $region42: #{tpu_custom_call.1} parent=39 // pred_check_branch
          %279 = sbr.rel (%p277) target = $region44
        $region43: #{tpu_custom_call.1} parent=39 // pred_region
          %280 = dma.done %s273, 256
        $region44: #{tpu_custom_call.1} parent=39 // pred_fallthru
          _
        %s281 = sand.u32 %s26, 1
        %s282 = scalar_lea.sflag [#allocation6], %s281
        %s283 = sand.u32 %s60, 1
        %s284 = smul.addr %s283, 16
        %s285 = scalar_lea.vmem [#allocation5], %s284
        // Predicated region
        $region45: #{tpu_custom_call.1} parent=39 // pred_check
          %p286 = pneg %p73
        $region46: #{tpu_custom_call.1} parent=39 // pred_check_branch
          %288 = sbr.rel (%p286) target = $region48
        $region47: #{tpu_custom_call.1} parent=39 // pred_region
          %289 = dma.done %s282, 256
        $region48: #{tpu_custom_call.1} parent=39 // pred_fallthru
          _
        %s290 = sand.u32 %s26, 1
        %s291 = scalar_lea.sflag [#allocation6], %s290
        %s292 = sand.u32 %s86, 1
        %s293 = smul.addr %s292, 16
        %s294 = scalar_lea.vmem [#allocation7], %s293
        // Predicated region
        $region49: #{tpu_custom_call.1} parent=39 // pred_check
          %p295 = pneg %p99
        $region50: #{tpu_custom_call.1} parent=39 // pred_check_branch
          %297 = sbr.rel (%p295) target = $region52
        $region51: #{tpu_custom_call.1} parent=39 // pred_region
          %298 = dma.done %s291, 256
        $region52: #{tpu_custom_call.1} parent=39 // pred_fallthru
          _
        // Predicated region
        $region53: #{tpu_custom_call.1} parent=39 // pred_check
          %p299 = pneg %p120
        $region54: #{tpu_custom_call.1} parent=39 // pred_check_branch
          %301 = sbr.rel (%p299) target = $region56
        $region55: #{tpu_custom_call.1} parent=39 // pred_region
          %302 = dma.done [#allocation9], 3072
        $region56: #{tpu_custom_call.1} parent=39 // pred_fallthru
          _
        %s303 = sand.u32 %s34, 1
        %s304 = scalar_lea.sflag [#allocation3], %s303
        %s305 = sand.u32 %s34, 1
        %s306 = smul.addr %s305, 16
        %s307 = scalar_lea.vmem [#allocation2], %s306
        %p308 = pneg %p47
        %p309 = pneg %p44
        %s310 = sand.u32 %s26, 1
        %s311 = scalar_lea.sflag [#allocation6], %s310
        %s312 = sand.u32 %s60, 1
        %s313 = smul.addr %s312, 16
        %s314 = scalar_lea.vmem [#allocation5], %s313
        %p315 = pneg %p73
        %p316 = pneg %p70
        %s317 = sand.u32 %s26, 1
        %s318 = scalar_lea.sflag [#allocation6], %s317
        %s319 = sand.u32 %s86, 1
        %s320 = smul.addr %s319, 16
        %s321 = scalar_lea.vmem [#allocation7], %s320
        %p322 = pneg %p99
        %p323 = pneg %p96
        %p324 = pneg %p120
        %p325 = pneg %p117
        %p326 = pneg %p141
        %p327 = pneg %p138
        %p328 = pneg %p167
        %p329 = pneg %p164
        %s330 = sand.u32 %s154, 1
        %s331 = scalar_lea.sflag [#allocation4], %s330
        %s332 = sand.u32 %s154, 1
        %s333 = smul.addr %s332, 16
        %s334 = scalar_lea.vmem [#allocation10], %s333
        %v336 = vld [vmem:[%s276] sm:$0xff]
        %v337 = vld [vmem:[%s276 + $0x8] sm:$0xff]
        %v338 = vpack.c.bf16 %v337, %v336
        %v339 = vld [vmem:[%s4] sm:$0x77]
        %v340 = vld [vmem:[%s4 + $0x8] sm:$0x7]
        %v341 = vld [vmem:[#allocation8] sm:$0xff]
        %v342 = vld [vmem:[#allocation8 + $0x8] sm:$0xf]
        %v343 = vld [vmem:[#allocation8 + $0xc] sm:$0xff]
        %v344 = vld [vmem:[#allocation8 + $0x14] sm:$0xf]
        %v345 = vld [vmem:[#allocation8 + $0x18] sm:$0xff]
        %v346 = vld [vmem:[#allocation8 + $0x20] sm:$0xf]
        %v347 = vld [vmem:[#allocation8 + $0x24] sm:$0xff]
        %v348 = vld [vmem:[#allocation8 + $0x2c] sm:$0xf]
        %v349 = vld [vmem:[#allocation8 + $0x30] sm:$0xff]
        %v350 = vld [vmem:[#allocation8 + $0x38] sm:$0xf]
        %v351 = vld [vmem:[#allocation8 + $0x3c] sm:$0xff]
        %v352 = vld [vmem:[#allocation8 + $0x44] sm:$0xf]
        %v353 = vld [vmem:[#allocation8 + $0x48] sm:$0xff]
        %v354 = vld [vmem:[#allocation8 + $0x50] sm:$0xf]
        %v355 = vld [vmem:[#allocation8 + $0x54] sm:$0xff]
        %v356 = vld [vmem:[#allocation8 + $0x5c] sm:$0xf]
        %v357 = vld [vmem:[#allocation8 + $0x60] sm:$0xff]
        %v358 = vld [vmem:[#allocation8 + $0x68] sm:$0xf]
        %v359 = vld [vmem:[#allocation8 + $0x6c] sm:$0xff]
        %v360 = vld [vmem:[#allocation8 + $0x74] sm:$0xf]
        %v361 = vld [vmem:[#allocation8 + $0x78] sm:$0xff]
        %v362 = vld [vmem:[#allocation8 + $0x80] sm:$0xf]
        %v363 = vld [vmem:[#allocation8 + $0x84] sm:$0xff]
        %v364 = vld [vmem:[#allocation8 + $0x8c] sm:$0xf]
        %v365 = vld [vmem:[#allocation8 + $0x90] sm:$0xff]
        %v366 = vld [vmem:[#allocation8 + $0x98] sm:$0xf]
        %v367 = vld [vmem:[#allocation8 + $0x9c] sm:$0xff]
        %v368 = vld [vmem:[#allocation8 + $0xa4] sm:$0xf]
        %v369 = vld [vmem:[#allocation8 + $0xa8] sm:$0xff]
        %v370 = vld [vmem:[#allocation8 + $0xb0] sm:$0xf]
        %v371 = vld [vmem:[#allocation8 + $0xb4] sm:$0xff]
        %v372 = vld [vmem:[#allocation8 + $0xbc] sm:$0xf]
        %v375 = vlaneseq
        %v376 = vshrl.u32 %v375, 7
        %v377 = vsub.s32 0, %v376
        %v378 = vrot.slane %v339, %v377
        %v379 = vlaneseq
        %v380 = vshrl.u32 %v379, 7
        %v381 = vsub.s32 4, %v380
        %v382 = vrot.slane %v339, %v381
        %v383 = vlaneseq
        %v384 = vshrl.u32 %v383, 7
        %v385 = vsub.s32 0, %v384
        %v386 = vrot.slane %v340, %v385
        %v390 = vlaneseq
        %v391 = vshrl.u32 %v390, 7
        %v392 = vsub.s32 0, %v391
        %v393 = vrot.slane %v378, %v392
        %v394 = vlaneseq
        %v395 = vshrl.u32 %v394, 7
        %v396 = vsub.s32 0, %v395
        %v397 = vrot.slane %v382, %v396
        %v398 = vlaneseq
        %v399 = vshrl.u32 %v398, 7
        %v400 = vsub.s32 0, %v399
        %v401 = vrot.slane %v386, %v400
        %v434 = vunpack.c.l.b16 %v341
        %v435 = vunpack.c.h.b16 %v341
        %v436 = vunpack.c.l.b16 %v342
        %v437 = vunpack.c.l.b16 %v343
        %v438 = vunpack.c.h.b16 %v343
        %v439 = vunpack.c.l.b16 %v344
        %v440 = vunpack.c.l.b16 %v345
        %v441 = vunpack.c.h.b16 %v345
        %v442 = vunpack.c.l.b16 %v346
        %v443 = vunpack.c.l.b16 %v347
        %v444 = vunpack.c.h.b16 %v347
        %v445 = vunpack.c.l.b16 %v348
        %v446 = vunpack.c.l.b16 %v349
        %v447 = vunpack.c.h.b16 %v349
        %v448 = vunpack.c.l.b16 %v350
        %v449 = vunpack.c.l.b16 %v351
        %v450 = vunpack.c.h.b16 %v351
        %v451 = vunpack.c.l.b16 %v352
        %v452 = vunpack.c.l.b16 %v353
        %v453 = vunpack.c.h.b16 %v353
        %v454 = vunpack.c.l.b16 %v354
        %v455 = vunpack.c.l.b16 %v355
        %v456 = vunpack.c.h.b16 %v355
        %v457 = vunpack.c.l.b16 %v356
        %v458 = vunpack.c.l.b16 %v357
        %v459 = vunpack.c.h.b16 %v357
        %v460 = vunpack.c.l.b16 %v358
        %v461 = vunpack.c.l.b16 %v359
        %v462 = vunpack.c.h.b16 %v359
        %v463 = vunpack.c.l.b16 %v360
        %v464 = vunpack.c.l.b16 %v361
        %v465 = vunpack.c.h.b16 %v361
        %v466 = vunpack.c.l.b16 %v362
        %v467 = vunpack.c.l.b16 %v363
        %v468 = vunpack.c.h.b16 %v363
        %v469 = vunpack.c.l.b16 %v364
        %v470 = vunpack.c.l.b16 %v365
        %v471 = vunpack.c.h.b16 %v365
        %v472 = vunpack.c.l.b16 %v366
        %v473 = vunpack.c.l.b16 %v367
        %v474 = vunpack.c.h.b16 %v367
        %v475 = vunpack.c.l.b16 %v368
        %v476 = vunpack.c.l.b16 %v369
        %v477 = vunpack.c.h.b16 %v369
        %v478 = vunpack.c.l.b16 %v370
        %v479 = vunpack.c.l.b16 %v371
        %v480 = vunpack.c.h.b16 %v371
        %v481 = vunpack.c.l.b16 %v372
        %v482 = vpack.c.b16 %v437, %v434
        %v483 = vpack.c.b16 %v438, %v435
        %v484 = vpack.c.b16 %v439, %v436
        %v485 = vpack.c.b16 %v443, %v440
        %v486 = vpack.c.b16 %v444, %v441
        %v487 = vpack.c.b16 %v445, %v442
        %v488 = vpack.c.b16 %v449, %v446
        %v489 = vpack.c.b16 %v450, %v447
        %v490 = vpack.c.b16 %v451, %v448
        %v491 = vpack.c.b16 %v455, %v452
        %v492 = vpack.c.b16 %v456, %v453
        %v493 = vpack.c.b16 %v457, %v454
        %v494 = vpack.c.b16 %v461, %v458
        %v495 = vpack.c.b16 %v462, %v459
        %v496 = vpack.c.b16 %v463, %v460
        %v497 = vpack.c.b16 %v467, %v464
        %v498 = vpack.c.b16 %v468, %v465
        %v499 = vpack.c.b16 %v469, %v466
        %v500 = vpack.c.b16 %v473, %v470
        %v501 = vpack.c.b16 %v474, %v471
        %v502 = vpack.c.b16 %v475, %v472
        %v503 = vpack.c.b16 %v479, %v476
        %v504 = vpack.c.b16 %v480, %v477
        %v505 = vpack.c.b16 %v481, %v478
        %530 = vmatprep.subr.bf16.mxu0 %v483
        %531 = vmatpush1.bf16.msra.mxu0 %v482
        %532 = vmatprep.subr.bf16.mxu0 %v486
        %533 = vmatpush1.bf16.msra.mxu0 %v485
        %534 = vmatprep.subr.bf16.mxu0 %v489
        %535 = vmatpush1.bf16.msra.mxu0 %v488
        %536 = vmatprep.subr.bf16.mxu0 %v492
        %537 = vmatpush1.bf16.msra.mxu0 %v491
        %538 = vmatprep.subr.bf16.mxu0 %v495
        %539 = vmatpush1.bf16.msra.mxu0 %v494
        %540 = vmatprep.subr.bf16.mxu0 %v498
        %541 = vmatpush1.bf16.msra.mxu0 %v497
        %542 = vmatprep.subr.bf16.mxu0 %v501
        %543 = vmatpush1.bf16.msra.mxu0 %v500
        %544 = vmatprep.subr.bf16.mxu0 %v504
        %545 = vmatpush1.bf16.msra.mxu0 %v503
        %546 = vmatprep.subr.bf16.mxu0 0
        %547 = vmatpush1.bf16.msra.mxu0 0
        %548 = vmatprep.subr.bf16.mxu0 0
        %549 = vmatpush1.bf16.msra.mxu0 0
        %550 = vmatprep.subr.bf16.mxu0 0
        %551 = vmatpush1.bf16.msra.mxu0 0
        %552 = vmatprep.subr.bf16.mxu0 0
        %553 = vmatpush1.bf16.msra.mxu0 0
        %554 = vmatprep.subr.bf16.mxu0 0
        %555 = vmatpush1.bf16.msra.mxu0 0
        %556 = vmatprep.subr.bf16.mxu0 0
        %557 = vmatpush1.bf16.msra.mxu0 0
        %558 = vmatprep.subr.bf16.mxu0 0
        %559 = vmatpush1.bf16.msra.mxu0 0
        %560 = vmatprep.subr.bf16.mxu0 0
        %561 = vmatpush1.bf16.msra.mxu0 0
        %562 = vmatprep.mubr.bf16.mxu0 0
        %563 = vmatmul.mubr.bf16.gmra.mrb[0].mxu0 %v338
        %v564 = vpop.f32.mrb[0].mxu0
        %v565 = vadd.f32 %v393, %v564
        %v566 = vpop.f32.mrb[0].mxu0
        %v567 = vadd.f32 %v397, %v566
        %v568 = vpop.f32.mrb[0].mxu0
        %v569 = vadd.f32 %v393, %v568
        %v570 = vpop.f32.mrb[0].mxu0
        %v571 = vadd.f32 %v397, %v570
        %572 = vdwg.mxu0
        %573 = vmatprep.subr.bf16.mxu0 0
        %574 = vmatpush1.bf16.msra.mxu0 %v484
        %575 = vmatprep.subr.bf16.mxu0 0
        %576 = vmatpush1.bf16.msra.mxu0 %v487
        %577 = vmatprep.subr.bf16.mxu0 0
        %578 = vmatpush1.bf16.msra.mxu0 %v490
        %579 = vmatprep.subr.bf16.mxu0 0
        %580 = vmatpush1.bf16.msra.mxu0 %v493
        %581 = vmatprep.subr.bf16.mxu0 0
        %582 = vmatpush1.bf16.msra.mxu0 %v496
        %583 = vmatprep.subr.bf16.mxu0 0
        %584 = vmatpush1.bf16.msra.mxu0 %v499
        %585 = vmatprep.subr.bf16.mxu0 0
        %586 = vmatpush1.bf16.msra.mxu0 %v502
        %587 = vmatprep.subr.bf16.mxu0 0
        %588 = vmatpush1.bf16.msra.mxu0 %v505
        %589 = vmatprep.subr.bf16.mxu0 0
        %590 = vmatpush1.bf16.msra.mxu0 0
        %591 = vmatprep.subr.bf16.mxu0 0
        %592 = vmatpush1.bf16.msra.mxu0 0
        %593 = vmatprep.subr.bf16.mxu0 0
        %594 = vmatpush1.bf16.msra.mxu0 0
        %595 = vmatprep.subr.bf16.mxu0 0
        %596 = vmatpush1.bf16.msra.mxu0 0
        %597 = vmatprep.subr.bf16.mxu0 0
        %598 = vmatpush1.bf16.msra.mxu0 0
        %599 = vmatprep.subr.bf16.mxu0 0
        %600 = vmatpush1.bf16.msra.mxu0 0
        %601 = vmatprep.subr.bf16.mxu0 0
        %602 = vmatpush1.bf16.msra.mxu0 0
        %603 = vmatprep.subr.bf16.mxu0 0
        %604 = vmatpush1.bf16.msra.mxu0 0
        %605 = vmatprep.mubr.bf16.mxu0 0
        %606 = vmatmul.mubr.bf16.gmra.mrb[0].mxu0 %v338
        %v607 = vpop.f32.mrb[0].mxu0
        %v608 = vadd.f32 %v401, %v607
        %v609 = vpop.f32.mrb[0].mxu0
        %v610 = vpop.f32.mrb[0].mxu0
        %v611 = vadd.f32 %v401, %v610
        %v612 = vpop.f32.mrb[0].mxu0
        %613 = vdwg.mxu0
        %v614 = vlaneseq
        %v615 = vshrl.u32 %v614, 7
        %v616 = vsub.s32 1, %v615
        %v617 = vrot.slane %v339, %v616
        %v618 = vlaneseq
        %v619 = vshrl.u32 %v618, 7
        %v620 = vsub.s32 5, %v619
        %v621 = vrot.slane %v339, %v620
        %v622 = vlaneseq
        %v623 = vshrl.u32 %v622, 7
        %v624 = vsub.s32 1, %v623
        %v625 = vrot.slane %v340, %v624
        %v629 = vlaneseq
        %v630 = vshrl.u32 %v629, 7
        %v631 = vsub.s32 1, %v630
        %v632 = vrot.slane %v617, %v631
        %v633 = vlaneseq
        %v634 = vshrl.u32 %v633, 7
        %v635 = vsub.s32 1, %v634
        %v636 = vrot.slane %v621, %v635
        %v637 = vlaneseq
        %v638 = vshrl.u32 %v637, 7
        %v639 = vsub.s32 1, %v638
        %v640 = vrot.slane %v625, %v639
        %v641 = vmul.f32 %v565, %v632
        %v642 = vmul.f32 %v567, %v636
        %v643 = vmul.f32 %v608, %v640
        %v644 = vmul.f32 %v569, %v632
        %v645 = vmul.f32 %v571, %v636
        %v646 = vmul.f32 %v611, %v640
        %v647 = vlaneseq
        %v648 = vshrl.u32 %v647, 7
        %v649 = vsub.s32 2, %v648
        %v650 = vrot.slane %v339, %v649
        %v651 = vlaneseq
        %v652 = vshrl.u32 %v651, 7
        %v653 = vsub.s32 6, %v652
        %v654 = vrot.slane %v339, %v653
        %v655 = vlaneseq
        %v656 = vshrl.u32 %v655, 7
        %v657 = vsub.s32 2, %v656
        %v658 = vrot.slane %v340, %v657
        %v662 = vlaneseq
        %v663 = vshrl.u32 %v662, 7
        %v664 = vsub.s32 2, %v663
        %v665 = vrot.slane %v650, %v664
        %v666 = vlaneseq
        %v667 = vshrl.u32 %v666, 7
        %v668 = vsub.s32 2, %v667
        %v669 = vrot.slane %v654, %v668
        %v670 = vlaneseq
        %v671 = vshrl.u32 %v670, 7
        %v672 = vsub.s32 2, %v671
        %v673 = vrot.slane %v658, %v672
        %v674 = vadd.f32 %v641, %v665
        %v675 = vadd.f32 %v642, %v669
        %v676 = vadd.f32 %v643, %v673
        %v677 = vadd.f32 %v644, %v665
        %v678 = vadd.f32 %v645, %v669
        %v679 = vadd.f32 %v646, %v673
        %v680 = vxor.u32 %v674, 2147483648
        %v681 = vxor.u32 %v675, 2147483648
        %v682 = vxor.u32 %v676, 2147483648
        %v683 = vxor.u32 %v677, 2147483648
        %v684 = vxor.u32 %v678, 2147483648
        %v685 = vxor.u32 %v679, 2147483648
        %v686 = vmul.f32 %v680, 1.442695
        %v687 = vpow.pop %v686
        %v688 = vmul.f32 %v681, 1.442695
        %v689 = vpow.pop %v688
        %v690 = vmul.f32 %v682, 1.442695
        %v691 = vpow.pop %v690
        %v692 = vmul.f32 %v683, 1.442695
        %v693 = vpow.pop %v692
        %v694 = vmul.f32 %v684, 1.442695
        %v695 = vpow.pop %v694
        %v696 = vmul.f32 %v685, 1.442695
        %v697 = vpow.pop %v696
        %v698 = vadd.f32 %v687, 1.0
        %v699 = vadd.f32 %v689, 1.0
        %v700 = vadd.f32 %v691, 1.0
        %v701 = vadd.f32 %v693, 1.0
        %v702 = vadd.f32 %v695, 1.0
        %v703 = vadd.f32 %v697, 1.0
        %v704 = vrcp.pop %v698
        %v705 = vmul.f32 1.0, %v704
        %v706 = vrcp.pop %v699
        %v707 = vmul.f32 1.0, %v706
        %v708 = vrcp.pop %v700
        %v709 = vmul.f32 1.0, %v708
        %v710 = vrcp.pop %v701
        %v711 = vmul.f32 1.0, %v710
        %v712 = vrcp.pop %v702
        %v713 = vmul.f32 1.0, %v712
        %v714 = vrcp.pop %v703
        %v715 = vmul.f32 1.0, %v714
        %v716 = vmul.f32 %v565, %v705
        %v717 = vmul.f32 %v567, %v707
        %v718 = vmul.f32 %v608, %v709
        %v719 = vmul.f32 %v569, %v711
        %v720 = vmul.f32 %v571, %v713
        %v721 = vmul.f32 %v611, %v715
        %v722 = vpack.c.bf16 %v719, %v716
        %v723 = vpack.c.bf16 %v720, %v717
        %v724 = vld [vmem:[%s285] sm:$0xff]
        %v725 = vld [vmem:[%s285 + $0x8] sm:$0xff]
        %v726 = vpack.c.bf16 %v725, %v724
        %v727 = vld [vmem:[%s294] sm:$0xff]
        %v728 = vld [vmem:[%s294 + $0x8] sm:$0xff]
        %v729 = vpack.c.bf16 %v728, %v727
        %vm730 = vcmask 130048
        %v732 = vsel %vm730, %v729, 0
        %734 = vmatprep.subr.bf16.mxu0 0
        %735 = vmatpush1.bf16.msra.mxu0 %v723
        %736 = vmatprep.subr.bf16.mxu0 0
        %737 = vmatpush1.bf16.msra.mxu0 0
        %738 = vmatprep.subr.bf16.mxu0 0
        %739 = vmatpush1.bf16.msra.mxu0 0
        %740 = vmatprep.subr.bf16.mxu0 0
        %741 = vmatpush1.bf16.msra.mxu0 0
        %742 = vmatprep.subr.bf16.mxu0 0
        %743 = vmatpush1.bf16.msra.mxu0 0
        %744 = vmatprep.subr.bf16.mxu0 0
        %745 = vmatpush1.bf16.msra.mxu0 0
        %746 = vmatprep.subr.bf16.mxu0 0
        %747 = vmatpush1.bf16.msra.mxu0 0
        %748 = vmatprep.subr.bf16.mxu0 0
        %749 = vmatpush1.bf16.msra.mxu0 0
        %750 = vmatprep.subr.bf16.mxu0 0
        %751 = vmatpush1.bf16.msra.mxu0 0
        %752 = vmatprep.subr.bf16.mxu0 0
        %753 = vmatpush1.bf16.msra.mxu0 0
        %754 = vmatprep.subr.bf16.mxu0 0
        %755 = vmatpush1.bf16.msra.mxu0 0
        %756 = vmatprep.subr.bf16.mxu0 0
        %757 = vmatpush1.bf16.msra.mxu0 0
        %758 = vmatprep.subr.bf16.mxu0 0
        %759 = vmatpush1.bf16.msra.mxu0 0
        %760 = vmatprep.subr.bf16.mxu0 0
        %761 = vmatpush1.bf16.msra.mxu0 0
        %762 = vmatprep.subr.bf16.mxu0 0
        %763 = vmatpush1.bf16.msra.mxu0 0
        %764 = vmatprep.subr.bf16.mxu0 0
        %765 = vmatpush1.bf16.msra.mxu0 0
        %766 = vmatprep.mubr.bf16.mxu0 0
        %767 = vmatmul.mubr.bf16.gmra.mrb[0].mxu0 %v732
        %v768 = vpop.f32.mrb[0].mxu0
        %v769 = vadd.f32 0.0, %v768
        %v770 = vpop.f32.mrb[0].mxu0
        %v771 = vpop.f32.mrb[0].mxu0
        %v772 = vadd.f32 0.0, %v771
        %v773 = vpop.f32.mrb[0].mxu0
        %774 = vdwg.mxu0
        %v776 = vsel %vm730, %v726, 0
        %778 = vmatprep.subr.bf16.mxu0 0
        %779 = vmatpush1.bf16.msra.mxu0 %v722
        %780 = vmatprep.subr.bf16.mxu0 0
        %781 = vmatpush1.bf16.msra.mxu0 0
        %782 = vmatprep.subr.bf16.mxu0 0
        %783 = vmatpush1.bf16.msra.mxu0 0
        %784 = vmatprep.subr.bf16.mxu0 0
        %785 = vmatpush1.bf16.msra.mxu0 0
        %786 = vmatprep.subr.bf16.mxu0 0
        %787 = vmatpush1.bf16.msra.mxu0 0
        %788 = vmatprep.subr.bf16.mxu0 0
        %789 = vmatpush1.bf16.msra.mxu0 0
        %790 = vmatprep.subr.bf16.mxu0 0
        %791 = vmatpush1.bf16.msra.mxu0 0
        %792 = vmatprep.subr.bf16.mxu0 0
        %793 = vmatpush1.bf16.msra.mxu0 0
        %794 = vmatprep.subr.bf16.mxu0 0
        %795 = vmatpush1.bf16.msra.mxu0 0
        %796 = vmatprep.subr.bf16.mxu0 0
        %797 = vmatpush1.bf16.msra.mxu0 0
        %798 = vmatprep.subr.bf16.mxu0 0
        %799 = vmatpush1.bf16.msra.mxu0 0
        %800 = vmatprep.subr.bf16.mxu0 0
        %801 = vmatpush1.bf16.msra.mxu0 0
        %802 = vmatprep.subr.bf16.mxu0 0
        %803 = vmatpush1.bf16.msra.mxu0 0
        %804 = vmatprep.subr.bf16.mxu0 0
        %805 = vmatpush1.bf16.msra.mxu0 0
        %806 = vmatprep.subr.bf16.mxu0 0
        %807 = vmatpush1.bf16.msra.mxu0 0
        %808 = vmatprep.subr.bf16.mxu0 0
        %809 = vmatpush1.bf16.msra.mxu0 0
        %810 = vmatprep.mubr.bf16.mxu0 0
        %811 = vmatmul.mubr.bf16.gmra.mrb[0].mxu0 %v776
        %v812 = vpop.f32.mrb[0].mxu0
        %v813 = vadd.f32 %v769, %v812
        %v814 = vpop.f32.mrb[0].mxu0
        %v815 = vpop.f32.mrb[0].mxu0
        %v816 = vadd.f32 %v772, %v815
        %v817 = vpop.f32.mrb[0].mxu0
        %818 = vdwg.mxu0
        %v819 = vadd.f32 %v813, %v718
        %v820 = vadd.f32 %v816, %v721
        %821 = vst [vmem:[%s334] sm:$0xff] %v819
        %822 = vst [vmem:[%s334 + $0x8] sm:$0xff] %v820
        %s823 = sand.u32 %s154, 1
        %s824 = scalar_lea.sflag [#allocation4], %s823
        %s825 = sand.u32 %s154, 1
        %s826 = smul.addr %s825, 16
        %s827 = scalar_lea.vmem [#allocation10], %s826
        // Predicated region
        $region57: #{tpu_custom_call.1} parent=39 // pred_check
          %p828 = pneg %p164
        $region58: #{tpu_custom_call.1} parent=39 // pred_check_branch
          %830 = sbr.rel (%p828) target = $region60
        $region59: #{tpu_custom_call.1} parent=39 // pred_region
          %s832 = ssub.s32 256, 256
          %833 = vsyncadd %s824, %s832
          %s834 = smul.addr %s26, 2
          %s835 = smul.addr %s834, 128
          %s836 = scalar_lea.hbm %s5, %s835
          %s837 = sshll.u32 %s827, 4
          %s838 = int_to_ptr.vmem [resolvable:$true] %s837
          %843 = dma.vmem_to_hbm [thread:$0]  %s838, 256, %s836, %s824, 128, 128, 8
        $region60: #{tpu_custom_call.1} parent=39 // pred_fallthru
          _
      $region40: #{tpu_custom_call.1} parent=5 // pred_fallthru
        _
      %p844 = scmp.le.s32.totalorder 2, %s21
      // Predicated region
      $region61: #{tpu_custom_call.1} parent=5 // pred_check
        %p845 = pneg %p844
      $region62: #{tpu_custom_call.1} parent=5 // pred_check_branch
        %847 = sbr.rel (%p845) target = $region64
      $region63: #{tpu_custom_call.1} parent=5 // pred_region
        %s848 = ssub.s32 %s21, 2
        // Predicated region
        $region65: #{tpu_custom_call.1} parent=63 // pred_check
          %p849 = pneg %p170
        $region66: #{tpu_custom_call.1} parent=63 // pred_check_branch
          %851 = sbr.rel (%p849) target = $region68
        $region67: #{tpu_custom_call.1} parent=63 // pred_region
          %s852 = sand.u32 %s155, 1
          %s853 = scalar_lea.sflag [#allocation4], %s852
          %s854 = sand.u32 %s155, 1
          %s855 = smul.addr %s854, 16
          %s856 = scalar_lea.vmem [#allocation10], %s855
          %857 = dma.done %s853, 256
        $region68: #{tpu_custom_call.1} parent=63 // pred_fallthru
          _
      $region64: #{tpu_custom_call.1} parent=5 // pred_fallthru
        _
    $region6: #{tpu_custom_call.1} parent=1 // loop_footer
      %s25 = sadd.s32 1, %s21
    $region7: #{tpu_custom_call.1} parent=1 // loop_footer_branch
      %20 = sbr.rel target = $region3
    $region8: #{tpu_custom_call.1} parent=1 // loop_exit
      _
    %858 = vsyncpa [#allocation3], 1
    %s859 = scalar_lea.sflag [#allocation3], 1
    %860 = vsyncpa %s859, 1
    %861 = vsyncpa [#allocation6], 1
    %s862 = scalar_lea.sflag [#allocation6], 1
    %863 = vsyncpa %s862, 1
    %864 = vsyncpa [#allocation9], 1
    %865 = vsyncpa [#allocation4], 1
    %s866 = scalar_lea.sflag [#allocation4], 1
    %867 = vsyncpa %s866, 1

</llo_original>
